<compile_context>
chip_gen: v5e
topology: v5e:2x2
jax: 0.10.0
libtpu: 0.0.40
codegen_flags: <defaults>
</compile_context>

<pallas_src>
import jax
import jax.numpy as jnp
from jax import lax
from jax.experimental import pallas as pl
from jax.experimental.pallas import tpu as pltpu

# ----------------------------- model hyper-parameters -----------------------------
B = 2            # batch
T = 8            # sequence length == max_length (the torch bmm requires this)
V = 32           # num_embeddings (vocab)
E = 16           # embedding_size
H = 32           # hidden_size
C = 4            # num_classes

# TODO(synk): nn.Dropout(0.3) and the LSTM's dropout=0.5 are identity at inference
# (single LSTM layer + eval mode), so they are intentionally omitted.


# ----------------------------------- Pallas kernel ---------------------------------
def bilstm_attn_kernel(
    xa_ref,    # (T*B, 2E)   time-aligned embedded input rows: [x_t | x_{T-1-t}]
    wih_ref,   # (2E, 8H)    [fwd rows ; bwd rows] x interleaved gate columns
    whh_ref,   # (2H, 8H)    block-diagonal hidden->hidden weights (interleaved columns)
    b_ref,     # (1, 8H)     combined (b_ih + b_hh) biases, interleaved columns
    aw_ref,    # (2H, T)     attn Linear weight (transposed)
    ab_ref,    # (1, T)      attn Linear bias
    lwr_ref,   # (T, 2H, C)  classifier weight reshaped
    lb_ref,    # (1, C)      classifier bias
    y_ref,     # (B, C)      output
    gx_ref,    # scratch VMEM (T*B, 8H): precomputed, time-aligned input gates
    seqf_ref,  # scratch VMEM (T, B, H): forward hidden states
    seqb_ref,  # scratch VMEM (T, B, H): backward hidden states
    app_ref,   # scratch VMEM (T, B, 2H): attention-applied context
):
    Tk, Bk, Hk = seqf_ref.shape
    H2 = 2 * Hk

    # ---- hoisted input projection: ONE matmul for both directions & all timesteps ----
    gx_ref[...] = (
        jnp.dot(xa_ref[...], wih_ref[...], preferred_element_type=jnp.float32)
        + b_ref[...]
    )

    whh = whh_ref[...]

    # ---- fused bidirectional recurrence: one (B,2H)@(2H,8H) matmul per step ----
    def step(s, carry):
        h_cat, c_cat = carry                                            # (B, 2H) each
        g = gx_ref[pl.ds(s * Bk, Bk), :] + jnp.dot(
            h_cat, whh, preferred_element_type=jnp.float32)             # (B, 8H)
        sg = jax.nn.sigmoid(g)          # full-width EUP pushes, slice afterwards
        tg = jnp.tanh(g)
        i_g = sg[:, 0:H2]
        f_g = sg[:, H2:2 * H2]
        g_g = tg[:, 2 * H2:3 * H2]
        o_g = sg[:, 3 * H2:4 * H2]
        c_new = f_g * c_cat + i_g * g_g
        h_new = o_g * jnp.tanh(c_new)
        seqf_ref[s] = h_new[:, 0:Hk]              # forward  h_t       at time s
        seqb_ref[Tk - 1 - s] = h_new[:, Hk:H2]    # backward h_{T-1-s} at time T-1-s
        return h_new, c_new

    h0 = jnp.zeros((Bk, H2), jnp.float32)
    c0 = jnp.zeros((Bk, H2), jnp.float32)
    lax.fori_loop(0, Tk, step, (h0, c0), unroll=True)

    # ---- attention + bmm (unrolled over the tiny batch: 2 matmuls per element) ----
    seqf = seqf_ref[...]            # (T, B, H)
    seqb = seqb_ref[...]            # (T, B, H)
    aw = aw_ref[...]
    ab = ab_ref[...]
    for b in range(Bk):
        o_b = jnp.concatenate([seqf[:, b, :], seqb[:, b, :]], axis=-1)        # (T, 2H)
        a_b = jnp.tanh(
            jnp.dot(o_b, aw, preferred_element_type=jnp.float32) + ab)        # (T, T)
        # softmax over torch dim=1 == sequence axis (axis 0 of the (T, L) slice)
        m = jnp.max(a_b, axis=0, keepdims=True)
        e = jnp.exp(a_b - m)
        w_b = e * pl.reciprocal(jnp.sum(e, axis=0, keepdims=True), approx=True)
        applied_b = jnp.dot(w_b, o_b, preferred_element_type=jnp.float32)     # (T, 2H)
        app_ref[:, b:b + 1, :] = applied_b[:, None, :]

    # ---- classifier: one batched-(over T) contraction, then sigmoid ----
    partial = lax.dot_general(
        app_ref[...], lwr_ref[...],
        dimension_numbers=(((2,), (1,)), ((0,), (0,))),
        preferred_element_type=jnp.float32)                                   # (T, B, C)
    logits = jnp.sum(partial, axis=0) + lb_ref[...]                           # (B, C)
    y_ref[...] = jax.nn.sigmoid(logits).astype(y_ref.dtype)


# ------------------------------- wrapper-side packing -------------------------------
def _interleave_gate_cols(wf, wb):
    """Columns [i|f|g|o] of each direction -> [i_f i_b f_f f_b g_f g_b o_f o_b]."""
    pieces = []
    for k in range(4):
        pieces.append(wf[:, k * H:(k + 1) * H])
        pieces.append(wb[:, k * H:(k + 1) * H])
    return jnp.concatenate(pieces, axis=1)


def _pack_params(p):
    zE = jnp.zeros((E, 4 * H), jnp.float32)
    zH = jnp.zeros((H, 4 * H), jnp.float32)
    wih_cat = jnp.concatenate(
        [_interleave_gate_cols(p["wih_f"], zE),
         _interleave_gate_cols(zE, p["wih_b"])], axis=0)          # (2E, 8H)
    whh_cat = jnp.concatenate(
        [_interleave_gate_cols(p["whh_f"], zH),
         _interleave_gate_cols(zH, p["whh_b"])], axis=0)          # (2H, 8H), block-diag
    b_cat = _interleave_gate_cols(p["b_f"], p["b_b"])             # (1, 8H)
    lwr = p["lin_w"].reshape(T, 2 * H, C)                         # (T, 2H, C)
    return wih_cat, whh_cat, b_cat, lwr


def _full_spec(shape):
    n = len(shape)
    return pl.BlockSpec(shape, lambda i, _n=n: (0,) * _n)


def bilstm_model_forward(tokens, params):
    """tokens: (B, T) int32 -> (B, C) float32 class probabilities (sigmoid)."""
    x = jnp.take(params["emb"], tokens, axis=0).astype(jnp.float32)   # (B, T, E) glue
    x_tbe = jnp.transpose(x, (1, 0, 2))                               # (T, B, E)
    xa = jnp.concatenate([x_tbe, x_tbe[::-1]], axis=-1)               # (T, B, 2E), time-aligned
    xa = xa.reshape(T * B, 2 * E)

    wih_cat, whh_cat, b_cat, lwr = _pack_params(params)

    inputs = [xa, wih_cat, whh_cat, b_cat,
              params["attn_w"], params["attn_b"], lwr, params["lin_b"]]
    in_specs = [_full_spec(a.shape) for a in inputs]

    return pl.pallas_call(
        bilstm_attn_kernel,
        out_shape=jax.ShapeDtypeStruct((B, C), jnp.float32),
        grid=(1,),
        in_specs=in_specs,
        out_specs=_full_spec((B, C)),
        scratch_shapes=[
            pltpu.VMEM((T * B, 8 * H), jnp.float32),
            pltpu.VMEM((T, B, H), jnp.float32),
            pltpu.VMEM((T, B, H), jnp.float32),
            pltpu.VMEM((T, B, 2 * H), jnp.float32),
        ],
        compiler_params=pltpu.CompilerParams(
            dimension_semantics=("arbitrary",),
        ),
    )(*inputs)


# ------------------------------- pure-JAX reference --------------------------------
def reference_forward(tokens, p):
    x = jnp.take(p["emb"], tokens, axis=0).astype(jnp.float32)

    def run_dir(wih, whh, b, reverse):
        xs = x[:, ::-1, :] if reverse else x

        def step(carry, x_t):
            h, c = carry
            g = x_t @ wih + h @ whh + b
            i = jax.nn.sigmoid(g[:, :H])
            f = jax.nn.sigmoid(g[:, H:2 * H])
            gg = jnp.tanh(g[:, 2 * H:3 * H])
            o = jax.nn.sigmoid(g[:, 3 * H:])
            c = f * c + i * gg
            h = o * jnp.tanh(c)
            return (h, c), h

        init = (jnp.zeros((B, H), jnp.float32), jnp.zeros((B, H), jnp.float32))
        _, hs = lax.scan(step, init, jnp.swapaxes(xs, 0, 1))
        hs = jnp.swapaxes(hs, 0, 1)
        return hs[:, ::-1, :] if reverse else hs

    out = jnp.concatenate(
        [run_dir(p["wih_f"], p["whh_f"], p["b_f"], False),
         run_dir(p["wih_b"], p["whh_b"], p["b_b"], True)], axis=-1)        # (B, T, 2H)
    attn = jnp.einsum("btd,dl->btl", out, p["attn_w"]) + p["attn_b"]        # (B, T, T)
    w = jax.nn.softmax(jnp.tanh(attn), axis=1)
    applied = jnp.einsum("btl,bld->btd", w, out)                            # (B, T, 2H)
    flat = applied.reshape(B, -1)
    return jax.nn.sigmoid(flat @ p["lin_w"] + p["lin_b"])


# ---------------------------------------- main --------------------------------------
if __name__ == "__main__":
    key = jax.random.PRNGKey(0)
    ks = jax.random.split(key, 12)

    def init(k, shape, scale=0.1):
        return (jax.random.normal(k, shape, jnp.float32) * scale)

    emb = init(ks[0], (V, E)).at[0].set(0.0)      # padding_idx = 0
    params = {
        "emb": emb,
        "wih_f": init(ks[1], (E, 4 * H)),
        "whh_f": init(ks[2], (H, 4 * H)),
        "b_f": init(ks[3], (1, 4 * H)),
        "wih_b": init(ks[4], (E, 4 * H)),
        "whh_b": init(ks[5], (H, 4 * H)),
        "b_b": init(ks[6], (1, 4 * H)),
        "attn_w": init(ks[7], (2 * H, T)),
        "attn_b": init(ks[8], (1, T)),
        "lin_w": init(ks[9], (T * 2 * H, C)),
        "lin_b": init(ks[10], (1, C)),
    }

    tokens = jax.random.randint(ks[11], (B, T), 0, V, dtype=jnp.int32)

    y = jax.jit(bilstm_model_forward)(tokens, params)
    y = jax.block_until_ready(y)

    y_ref = jax.block_until_ready(jax.jit(reference_forward)(tokens, params))
    assert y.shape == (B, C)
    assert jnp.allclose(y, y_ref, rtol=1e-2, atol=1e-2), (y, y_ref)

    print("KERNEL_OK")
</pallas_src>

<mosaic_0001>
module attributes {stable_mosaic.version = 11 : i64} {
  func.func @bilstm_attn_kernel(%arg0: i32, %arg1: memref<16x32xf32, #tpu.memory_space<vmem>>, %arg2: memref<32x256xf32, #tpu.memory_space<vmem>>, %arg3: memref<64x256xf32, #tpu.memory_space<vmem>>, %arg4: memref<1x256xf32, #tpu.memory_space<vmem>>, %arg5: memref<64x8xf32, #tpu.memory_space<vmem>>, %arg6: memref<1x8xf32, #tpu.memory_space<vmem>>, %arg7: memref<8x64x4xf32, #tpu.memory_space<vmem>>, %arg8: memref<1x4xf32, #tpu.memory_space<vmem>>, %arg9: memref<2x4xf32, #tpu.memory_space<vmem>>, %arg10: memref<16x256xf32, #tpu.memory_space<vmem>>, %arg11: memref<8x2x32xf32, #tpu.memory_space<vmem>>, %arg12: memref<8x2x32xf32, #tpu.memory_space<vmem>>, %arg13: memref<8x2x64xf32, #tpu.memory_space<vmem>>) attributes {dimension_semantics = [#tpu.dimension_semantics<arbitrary>], iteration_bounds = array<i64: 1>, scalar_prefetch = 0 : i64, scratch_operands = 4 : i64, tpu.core_type = #tpu.core_type<tc>, window_params = [{pipeline_mode = #tpu.pipeline_mode<synchronous>, transform_indices = @transform_0, window_bounds = array<i64: 16, 32>}, {pipeline_mode = #tpu.pipeline_mode<synchronous>, transform_indices = @transform_1, window_bounds = array<i64: 32, 256>}, {pipeline_mode = #tpu.pipeline_mode<synchronous>, transform_indices = @transform_2, window_bounds = array<i64: 64, 256>}, {pipeline_mode = #tpu.pipeline_mode<synchronous>, transform_indices = @transform_3, window_bounds = array<i64: 1, 256>}, {pipeline_mode = #tpu.pipeline_mode<synchronous>, transform_indices = @transform_4, window_bounds = array<i64: 64, 8>}, {pipeline_mode = #tpu.pipeline_mode<synchronous>, transform_indices = @transform_5, window_bounds = array<i64: 1, 8>}, {pipeline_mode = #tpu.pipeline_mode<synchronous>, transform_indices = @transform_6, window_bounds = array<i64: 8, 64, 4>}, {pipeline_mode = #tpu.pipeline_mode<synchronous>, transform_indices = @transform_7, window_bounds = array<i64: 1, 4>}, {pipeline_mode = #tpu.pipeline_mode<synchronous>, transform_indices = @transform_8, window_bounds = array<i64: 2, 4>}]} {
    %c0 = arith.constant 0 : index
    %c0_0 = arith.constant 0 : index
    %0 = vector.load %arg1[%c0, %c0_0] : memref<16x32xf32, #tpu.memory_space<vmem>>, vector<16x32xf32>
    %c0_1 = arith.constant 0 : index
    %c0_2 = arith.constant 0 : index
    %1 = vector.load %arg2[%c0_1, %c0_2] : memref<32x256xf32, #tpu.memory_space<vmem>>, vector<32x256xf32>
    %cst = arith.constant dense<0.000000e+00> : vector<16x256xf32>
    %2 = tpu.matmul %0, %1, %cst {dimension_numbers = #tpu.dot_dimension_numbers<[1], [0], [0], [1], [0, 0, 1, 1], [], []>} : vector<16x32xf32>, vector<32x256xf32>, vector<16x256xf32> -> vector<16x256xf32>
    %c0_3 = arith.constant 0 : index
    %c0_4 = arith.constant 0 : index
    %3 = vector.load %arg4[%c0_3, %c0_4] : memref<1x256xf32, #tpu.memory_space<vmem>>, vector<1x256xf32>
    %4 = vector.broadcast %3 : vector<1x256xf32> to vector<16x256xf32>
    %5 = arith.addf %2, %4 : vector<16x256xf32>
    %c0_5 = arith.constant 0 : index
    %c0_6 = arith.constant 0 : index
    %6 = vector.load %arg10[%c0_5, %c0_6] : memref<16x256xf32, #tpu.memory_space<vmem>>, vector<16x256xf32>
    tpu.vector_store %arg10[%c0_5, %c0_6], %5 {strides = array<i32>} : memref<16x256xf32, #tpu.memory_space<vmem>>, vector<16x256xf32>,
    %c0_7 = arith.constant 0 : index
    %c0_8 = arith.constant 0 : index
    %7 = vector.load %arg3[%c0_7, %c0_8] : memref<64x256xf32, #tpu.memory_space<vmem>>, vector<64x256xf32>
    %cst_9 = arith.constant 0.000000e+00 : f32
    %8 = vector.broadcast %cst_9 : f32 to vector<2x64xf32>
    %cst_10 = arith.constant 0.000000e+00 : f32
    %9 = vector.broadcast %cst_10 : f32 to vector<2x64xf32>
    %c0_i32 = arith.constant 0 : i32
    %c2_i32 = arith.constant 2 : i32
    %10 = arith.muli %c0_i32, %c2_i32 : i32
    %11 = arith.index_cast %10 : i32 to index
    %c0_11 = arith.constant 0 : index
    %12 = vector.load %arg10[%11, %c0_11] : memref<16x256xf32, #tpu.memory_space<vmem>>, vector<2x256xf32>
    %cst_12 = arith.constant dense<0.000000e+00> : vector<2x256xf32>
    %13 = tpu.matmul %8, %7, %cst_12 {dimension_numbers = #tpu.dot_dimension_numbers<[1], [0], [0], [1], [0, 0, 1, 1], [], []>} : vector<2x64xf32>, vector<64x256xf32>, vector<2x256xf32> -> vector<2x256xf32>
    %14 = arith.addf %12, %13 : vector<2x256xf32>
    %15 = arith.negf %14 : vector<2x256xf32>
    %16 = math.exp %15 : vector<2x256xf32>
    %cst_13 = arith.constant 1.000000e+00 : f32
    %17 = vector.broadcast %cst_13 : f32 to vector<2x256xf32>
    %18 = arith.addf %17, %16 : vector<2x256xf32>
    %19 = arith.divf %17, %18 : vector<2x256xf32>
    %20 = math.tanh %14 : vector<2x256xf32>
    %21 = vector.extract_strided_slice %19 {offsets = [0, 0], sizes = [2, 64], strides = [1, 1]} : vector<2x256xf32> to vector<2x64xf32>
    %22 = vector.extract_strided_slice %19 {offsets = [0, 64], sizes = [2, 64], strides = [1, 1]} : vector<2x256xf32> to vector<2x64xf32>
    %23 = vector.extract_strided_slice %20 {offsets = [0, 128], sizes = [2, 64], strides = [1, 1]} : vector<2x256xf32> to vector<2x64xf32>
    %24 = vector.extract_strided_slice %19 {offsets = [0, 192], sizes = [2, 64], strides = [1, 1]} : vector<2x256xf32> to vector<2x64xf32>
    %25 = arith.mulf %22, %9 : vector<2x64xf32>
    %26 = arith.mulf %21, %23 : vector<2x64xf32>
    %27 = arith.addf %25, %26 : vector<2x64xf32>
    %28 = math.tanh %27 : vector<2x64xf32>
    %29 = arith.mulf %24, %28 : vector<2x64xf32>
    %30 = vector.extract_strided_slice %29 {offsets = [0, 0], sizes = [2, 32], strides = [1, 1]} : vector<2x64xf32> to vector<2x32xf32>
    %31 = arith.index_cast %c0_i32 : i32 to index
    %c0_14 = arith.constant 0 : index
    %c0_15 = arith.constant 0 : index
    %32 = vector.load %arg11[%31, %c0_14, %c0_15] : memref<8x2x32xf32, #tpu.memory_space<vmem>>, vector<1x2x32xf32>
    %33 = vector.shape_cast %32 : vector<1x2x32xf32> to vector<2x32xf32>
    %34 = vector.shape_cast %30 : vector<2x32xf32> to vector<1x2x32xf32>
    tpu.vector_store %arg11[%31, %c0_14, %c0_15], %34 {strides = array<i32>} : memref<8x2x32xf32, #tpu.memory_space<vmem>>, vector<1x2x32xf32>,
    %35 = vector.extract_strided_slice %29 {offsets = [0, 32], sizes = [2, 32], strides = [1, 1]} : vector<2x64xf32> to vector<2x32xf32>
    %c7_i32 = arith.constant 7 : i32
    %36 = arith.subi %c7_i32, %c0_i32 : i32
    %37 = arith.index_cast %36 : i32 to index
    %c0_16 = arith.constant 0 : index
    %c0_17 = arith.constant 0 : index
    %38 = vector.load %arg12[%37, %c0_16, %c0_17] : memref<8x2x32xf32, #tpu.memory_space<vmem>>, vector<1x2x32xf32>
    %39 = vector.shape_cast %38 : vector<1x2x32xf32> to vector<2x32xf32>
    %40 = vector.shape_cast %35 : vector<2x32xf32> to vector<1x2x32xf32>
    tpu.vector_store %arg12[%37, %c0_16, %c0_17], %40 {strides = array<i32>} : memref<8x2x32xf32, #tpu.memory_space<vmem>>, vector<1x2x32xf32>,
    %c1_i32 = arith.constant 1 : i32
    %c2_i32_18 = arith.constant 2 : i32
    %41 = arith.muli %c1_i32, %c2_i32_18 : i32
    %42 = arith.index_cast %41 : i32 to index
    %c0_19 = arith.constant 0 : index
    %43 = vector.load %arg10[%42, %c0_19] : memref<16x256xf32, #tpu.memory_space<vmem>>, vector<2x256xf32>
    %cst_20 = arith.constant dense<0.000000e+00> : vector<2x256xf32>
    %44 = tpu.matmul %29, %7, %cst_20 {dimension_numbers = #tpu.dot_dimension_numbers<[1], [0], [0], [1], [0, 0, 1, 1], [], []>} : vector<2x64xf32>, vector<64x256xf32>, vector<2x256xf32> -> vector<2x256xf32>
    %45 = arith.addf %43, %44 : vector<2x256xf32>
    %46 = arith.negf %45 : vector<2x256xf32>
    %47 = math.exp %46 : vector<2x256xf32>
    %cst_21 = arith.constant 1.000000e+00 : f32
    %48 = vector.broadcast %cst_21 : f32 to vector<2x256xf32>
    %49 = arith.addf %48, %47 : vector<2x256xf32>
    %50 = arith.divf %48, %49 : vector<2x256xf32>
    %51 = math.tanh %45 : vector<2x256xf32>
    %52 = vector.extract_strided_slice %50 {offsets = [0, 0], sizes = [2, 64], strides = [1, 1]} : vector<2x256xf32> to vector<2x64xf32>
    %53 = vector.extract_strided_slice %50 {offsets = [0, 64], sizes = [2, 64], strides = [1, 1]} : vector<2x256xf32> to vector<2x64xf32>
    %54 = vector.extract_strided_slice %51 {offsets = [0, 128], sizes = [2, 64], strides = [1, 1]} : vector<2x256xf32> to vector<2x64xf32>
    %55 = vector.extract_strided_slice %50 {offsets = [0, 192], sizes = [2, 64], strides = [1, 1]} : vector<2x256xf32> to vector<2x64xf32>
    %56 = arith.mulf %53, %27 : vector<2x64xf32>
    %57 = arith.mulf %52, %54 : vector<2x64xf32>
    %58 = arith.addf %56, %57 : vector<2x64xf32>
    %59 = math.tanh %58 : vector<2x64xf32>
    %60 = arith.mulf %55, %59 : vector<2x64xf32>
    %61 = vector.extract_strided_slice %60 {offsets = [0, 0], sizes = [2, 32], strides = [1, 1]} : vector<2x64xf32> to vector<2x32xf32>
    %62 = arith.index_cast %c1_i32 : i32 to index
    %c0_22 = arith.constant 0 : index
    %c0_23 = arith.constant 0 : index
    %63 = vector.load %arg11[%62, %c0_22, %c0_23] : memref<8x2x32xf32, #tpu.memory_space<vmem>>, vector<1x2x32xf32>
    %64 = vector.shape_cast %63 : vector<1x2x32xf32> to vector<2x32xf32>
    %65 = vector.shape_cast %61 : vector<2x32xf32> to vector<1x2x32xf32>
    tpu.vector_store %arg11[%62, %c0_22, %c0_23], %65 {strides = array<i32>} : memref<8x2x32xf32, #tpu.memory_space<vmem>>, vector<1x2x32xf32>,
    %66 = vector.extract_strided_slice %60 {offsets = [0, 32], sizes = [2, 32], strides = [1, 1]} : vector<2x64xf32> to vector<2x32xf32>
    %c7_i32_24 = arith.constant 7 : i32
    %67 = arith.subi %c7_i32_24, %c1_i32 : i32
    %68 = arith.index_cast %67 : i32 to index
    %c0_25 = arith.constant 0 : index
    %c0_26 = arith.constant 0 : index
    %69 = vector.load %arg12[%68, %c0_25, %c0_26] : memref<8x2x32xf32, #tpu.memory_space<vmem>>, vector<1x2x32xf32>
    %70 = vector.shape_cast %69 : vector<1x2x32xf32> to vector<2x32xf32>
    %71 = vector.shape_cast %66 : vector<2x32xf32> to vector<1x2x32xf32>
    tpu.vector_store %arg12[%68, %c0_25, %c0_26], %71 {strides = array<i32>} : memref<8x2x32xf32, #tpu.memory_space<vmem>>, vector<1x2x32xf32>,
    %c2_i32_27 = arith.constant 2 : i32
    %c2_i32_28 = arith.constant 2 : i32
    %72 = arith.muli %c2_i32_27, %c2_i32_28 : i32
    %73 = arith.index_cast %72 : i32 to index
    %c0_29 = arith.constant 0 : index
    %74 = vector.load %arg10[%73, %c0_29] : memref<16x256xf32, #tpu.memory_space<vmem>>, vector<2x256xf32>
    %cst_30 = arith.constant dense<0.000000e+00> : vector<2x256xf32>
    %75 = tpu.matmul %60, %7, %cst_30 {dimension_numbers = #tpu.dot_dimension_numbers<[1], [0], [0], [1], [0, 0, 1, 1], [], []>} : vector<2x64xf32>, vector<64x256xf32>, vector<2x256xf32> -> vector<2x256xf32>
    %76 = arith.addf %74, %75 : vector<2x256xf32>
    %77 = arith.negf %76 : vector<2x256xf32>
    %78 = math.exp %77 : vector<2x256xf32>
    %cst_31 = arith.constant 1.000000e+00 : f32
    %79 = vector.broadcast %cst_31 : f32 to vector<2x256xf32>
    %80 = arith.addf %79, %78 : vector<2x256xf32>
    %81 = arith.divf %79, %80 : vector<2x256xf32>
    %82 = math.tanh %76 : vector<2x256xf32>
    %83 = vector.extract_strided_slice %81 {offsets = [0, 0], sizes = [2, 64], strides = [1, 1]} : vector<2x256xf32> to vector<2x64xf32>
    %84 = vector.extract_strided_slice %81 {offsets = [0, 64], sizes = [2, 64], strides = [1, 1]} : vector<2x256xf32> to vector<2x64xf32>
    %85 = vector.extract_strided_slice %82 {offsets = [0, 128], sizes = [2, 64], strides = [1, 1]} : vector<2x256xf32> to vector<2x64xf32>
    %86 = vector.extract_strided_slice %81 {offsets = [0, 192], sizes = [2, 64], strides = [1, 1]} : vector<2x256xf32> to vector<2x64xf32>
    %87 = arith.mulf %84, %58 : vector<2x64xf32>
    %88 = arith.mulf %83, %85 : vector<2x64xf32>
    %89 = arith.addf %87, %88 : vector<2x64xf32>
    %90 = math.tanh %89 : vector<2x64xf32>
    %91 = arith.mulf %86, %90 : vector<2x64xf32>
    %92 = vector.extract_strided_slice %91 {offsets = [0, 0], sizes = [2, 32], strides = [1, 1]} : vector<2x64xf32> to vector<2x32xf32>
    %93 = arith.index_cast %c2_i32_27 : i32 to index
    %c0_32 = arith.constant 0 : index
    %c0_33 = arith.constant 0 : index
    %94 = vector.load %arg11[%93, %c0_32, %c0_33] : memref<8x2x32xf32, #tpu.memory_space<vmem>>, vector<1x2x32xf32>
    %95 = vector.shape_cast %94 : vector<1x2x32xf32> to vector<2x32xf32>
    %96 = vector.shape_cast %92 : vector<2x32xf32> to vector<1x2x32xf32>
    tpu.vector_store %arg11[%93, %c0_32, %c0_33], %96 {strides = array<i32>} : memref<8x2x32xf32, #tpu.memory_space<vmem>>, vector<1x2x32xf32>,
    %97 = vector.extract_strided_slice %91 {offsets = [0, 32], sizes = [2, 32], strides = [1, 1]} : vector<2x64xf32> to vector<2x32xf32>
    %c7_i32_34 = arith.constant 7 : i32
    %98 = arith.subi %c7_i32_34, %c2_i32_27 : i32
    %99 = arith.index_cast %98 : i32 to index
    %c0_35 = arith.constant 0 : index
    %c0_36 = arith.constant 0 : index
    %100 = vector.load %arg12[%99, %c0_35, %c0_36] : memref<8x2x32xf32, #tpu.memory_space<vmem>>, vector<1x2x32xf32>
    %101 = vector.shape_cast %100 : vector<1x2x32xf32> to vector<2x32xf32>
    %102 = vector.shape_cast %97 : vector<2x32xf32> to vector<1x2x32xf32>
    tpu.vector_store %arg12[%99, %c0_35, %c0_36], %102 {strides = array<i32>} : memref<8x2x32xf32, #tpu.memory_space<vmem>>, vector<1x2x32xf32>,
    %c3_i32 = arith.constant 3 : i32
    %c2_i32_37 = arith.constant 2 : i32
    %103 = arith.muli %c3_i32, %c2_i32_37 : i32
    %104 = arith.index_cast %103 : i32 to index
    %c0_38 = arith.constant 0 : index
    %105 = vector.load %arg10[%104, %c0_38] : memref<16x256xf32, #tpu.memory_space<vmem>>, vector<2x256xf32>
    %cst_39 = arith.constant dense<0.000000e+00> : vector<2x256xf32>
    %106 = tpu.matmul %91, %7, %cst_39 {dimension_numbers = #tpu.dot_dimension_numbers<[1], [0], [0], [1], [0, 0, 1, 1], [], []>} : vector<2x64xf32>, vector<64x256xf32>, vector<2x256xf32> -> vector<2x256xf32>
    %107 = arith.addf %105, %106 : vector<2x256xf32>
    %108 = arith.negf %107 : vector<2x256xf32>
    %109 = math.exp %108 : vector<2x256xf32>
    %cst_40 = arith.constant 1.000000e+00 : f32
    %110 = vector.broadcast %cst_40 : f32 to vector<2x256xf32>
    %111 = arith.addf %110, %109 : vector<2x256xf32>
    %112 = arith.divf %110, %111 : vector<2x256xf32>
    %113 = math.tanh %107 : vector<2x256xf32>
    %114 = vector.extract_strided_slice %112 {offsets = [0, 0], sizes = [2, 64], strides = [1, 1]} : vector<2x256xf32> to vector<2x64xf32>
    %115 = vector.extract_strided_slice %112 {offsets = [0, 64], sizes = [2, 64], strides = [1, 1]} : vector<2x256xf32> to vector<2x64xf32>
    %116 = vector.extract_strided_slice %113 {offsets = [0, 128], sizes = [2, 64], strides = [1, 1]} : vector<2x256xf32> to vector<2x64xf32>
    %117 = vector.extract_strided_slice %112 {offsets = [0, 192], sizes = [2, 64], strides = [1, 1]} : vector<2x256xf32> to vector<2x64xf32>
    %118 = arith.mulf %115, %89 : vector<2x64xf32>
    %119 = arith.mulf %114, %116 : vector<2x64xf32>
    %120 = arith.addf %118, %119 : vector<2x64xf32>
    %121 = math.tanh %120 : vector<2x64xf32>
    %122 = arith.mulf %117, %121 : vector<2x64xf32>
    %123 = vector.extract_strided_slice %122 {offsets = [0, 0], sizes = [2, 32], strides = [1, 1]} : vector<2x64xf32> to vector<2x32xf32>
    %124 = arith.index_cast %c3_i32 : i32 to index
    %c0_41 = arith.constant 0 : index
    %c0_42 = arith.constant 0 : index
    %125 = vector.load %arg11[%124, %c0_41, %c0_42] : memref<8x2x32xf32, #tpu.memory_space<vmem>>, vector<1x2x32xf32>
    %126 = vector.shape_cast %125 : vector<1x2x32xf32> to vector<2x32xf32>
    %127 = vector.shape_cast %123 : vector<2x32xf32> to vector<1x2x32xf32>
    tpu.vector_store %arg11[%124, %c0_41, %c0_42], %127 {strides = array<i32>} : memref<8x2x32xf32, #tpu.memory_space<vmem>>, vector<1x2x32xf32>,
    %128 = vector.extract_strided_slice %122 {offsets = [0, 32], sizes = [2, 32], strides = [1, 1]} : vector<2x64xf32> to vector<2x32xf32>
    %c7_i32_43 = arith.constant 7 : i32
    %129 = arith.subi %c7_i32_43, %c3_i32 : i32
    %130 = arith.index_cast %129 : i32 to index
    %c0_44 = arith.constant 0 : index
    %c0_45 = arith.constant 0 : index
    %131 = vector.load %arg12[%130, %c0_44, %c0_45] : memref<8x2x32xf32, #tpu.memory_space<vmem>>, vector<1x2x32xf32>
    %132 = vector.shape_cast %131 : vector<1x2x32xf32> to vector<2x32xf32>
    %133 = vector.shape_cast %128 : vector<2x32xf32> to vector<1x2x32xf32>
    tpu.vector_store %arg12[%130, %c0_44, %c0_45], %133 {strides = array<i32>} : memref<8x2x32xf32, #tpu.memory_space<vmem>>, vector<1x2x32xf32>,
    %c4_i32 = arith.constant 4 : i32
    %c2_i32_46 = arith.constant 2 : i32
    %134 = arith.muli %c4_i32, %c2_i32_46 : i32
    %135 = arith.index_cast %134 : i32 to index
    %c0_47 = arith.constant 0 : index
    %136 = vector.load %arg10[%135, %c0_47] : memref<16x256xf32, #tpu.memory_space<vmem>>, vector<2x256xf32>
    %cst_48 = arith.constant dense<0.000000e+00> : vector<2x256xf32>
    %137 = tpu.matmul %122, %7, %cst_48 {dimension_numbers = #tpu.dot_dimension_numbers<[1], [0], [0], [1], [0, 0, 1, 1], [], []>} : vector<2x64xf32>, vector<64x256xf32>, vector<2x256xf32> -> vector<2x256xf32>
    %138 = arith.addf %136, %137 : vector<2x256xf32>
    %139 = arith.negf %138 : vector<2x256xf32>
    %140 = math.exp %139 : vector<2x256xf32>
    %cst_49 = arith.constant 1.000000e+00 : f32
    %141 = vector.broadcast %cst_49 : f32 to vector<2x256xf32>
    %142 = arith.addf %141, %140 : vector<2x256xf32>
    %143 = arith.divf %141, %142 : vector<2x256xf32>
    %144 = math.tanh %138 : vector<2x256xf32>
    %145 = vector.extract_strided_slice %143 {offsets = [0, 0], sizes = [2, 64], strides = [1, 1]} : vector<2x256xf32> to vector<2x64xf32>
    %146 = vector.extract_strided_slice %143 {offsets = [0, 64], sizes = [2, 64], strides = [1, 1]} : vector<2x256xf32> to vector<2x64xf32>
    %147 = vector.extract_strided_slice %144 {offsets = [0, 128], sizes = [2, 64], strides = [1, 1]} : vector<2x256xf32> to vector<2x64xf32>
    %148 = vector.extract_strided_slice %143 {offsets = [0, 192], sizes = [2, 64], strides = [1, 1]} : vector<2x256xf32> to vector<2x64xf32>
    %149 = arith.mulf %146, %120 : vector<2x64xf32>
    %150 = arith.mulf %145, %147 : vector<2x64xf32>
    %151 = arith.addf %149, %150 : vector<2x64xf32>
    %152 = math.tanh %151 : vector<2x64xf32>
    %153 = arith.mulf %148, %152 : vector<2x64xf32>
    %154 = vector.extract_strided_slice %153 {offsets = [0, 0], sizes = [2, 32], strides = [1, 1]} : vector<2x64xf32> to vector<2x32xf32>
    %155 = arith.index_cast %c4_i32 : i32 to index
    %c0_50 = arith.constant 0 : index
    %c0_51 = arith.constant 0 : index
    %156 = vector.load %arg11[%155, %c0_50, %c0_51] : memref<8x2x32xf32, #tpu.memory_space<vmem>>, vector<1x2x32xf32>
    %157 = vector.shape_cast %156 : vector<1x2x32xf32> to vector<2x32xf32>
    %158 = vector.shape_cast %154 : vector<2x32xf32> to vector<1x2x32xf32>
    tpu.vector_store %arg11[%155, %c0_50, %c0_51], %158 {strides = array<i32>} : memref<8x2x32xf32, #tpu.memory_space<vmem>>, vector<1x2x32xf32>,
    %159 = vector.extract_strided_slice %153 {offsets = [0, 32], sizes = [2, 32], strides = [1, 1]} : vector<2x64xf32> to vector<2x32xf32>
    %c7_i32_52 = arith.constant 7 : i32
    %160 = arith.subi %c7_i32_52, %c4_i32 : i32
    %161 = arith.index_cast %160 : i32 to index
    %c0_53 = arith.constant 0 : index
    %c0_54 = arith.constant 0 : index
    %162 = vector.load %arg12[%161, %c0_53, %c0_54] : memref<8x2x32xf32, #tpu.memory_space<vmem>>, vector<1x2x32xf32>
    %163 = vector.shape_cast %162 : vector<1x2x32xf32> to vector<2x32xf32>
    %164 = vector.shape_cast %159 : vector<2x32xf32> to vector<1x2x32xf32>
    tpu.vector_store %arg12[%161, %c0_53, %c0_54], %164 {strides = array<i32>} : memref<8x2x32xf32, #tpu.memory_space<vmem>>, vector<1x2x32xf32>,
    %c5_i32 = arith.constant 5 : i32
    %c2_i32_55 = arith.constant 2 : i32
    %165 = arith.muli %c5_i32, %c2_i32_55 : i32
    %166 = arith.index_cast %165 : i32 to index
    %c0_56 = arith.constant 0 : index
    %167 = vector.load %arg10[%166, %c0_56] : memref<16x256xf32, #tpu.memory_space<vmem>>, vector<2x256xf32>
    %cst_57 = arith.constant dense<0.000000e+00> : vector<2x256xf32>
    %168 = tpu.matmul %153, %7, %cst_57 {dimension_numbers = #tpu.dot_dimension_numbers<[1], [0], [0], [1], [0, 0, 1, 1], [], []>} : vector<2x64xf32>, vector<64x256xf32>, vector<2x256xf32> -> vector<2x256xf32>
    %169 = arith.addf %167, %168 : vector<2x256xf32>
    %170 = arith.negf %169 : vector<2x256xf32>
    %171 = math.exp %170 : vector<2x256xf32>
    %cst_58 = arith.constant 1.000000e+00 : f32
    %172 = vector.broadcast %cst_58 : f32 to vector<2x256xf32>
    %173 = arith.addf %172, %171 : vector<2x256xf32>
    %174 = arith.divf %172, %173 : vector<2x256xf32>
    %175 = math.tanh %169 : vector<2x256xf32>
    %176 = vector.extract_strided_slice %174 {offsets = [0, 0], sizes = [2, 64], strides = [1, 1]} : vector<2x256xf32> to vector<2x64xf32>
    %177 = vector.extract_strided_slice %174 {offsets = [0, 64], sizes = [2, 64], strides = [1, 1]} : vector<2x256xf32> to vector<2x64xf32>
    %178 = vector.extract_strided_slice %175 {offsets = [0, 128], sizes = [2, 64], strides = [1, 1]} : vector<2x256xf32> to vector<2x64xf32>
    %179 = vector.extract_strided_slice %174 {offsets = [0, 192], sizes = [2, 64], strides = [1, 1]} : vector<2x256xf32> to vector<2x64xf32>
    %180 = arith.mulf %177, %151 : vector<2x64xf32>
    %181 = arith.mulf %176, %178 : vector<2x64xf32>
    %182 = arith.addf %180, %181 : vector<2x64xf32>
    %183 = math.tanh %182 : vector<2x64xf32>
    %184 = arith.mulf %179, %183 : vector<2x64xf32>
    %185 = vector.extract_strided_slice %184 {offsets = [0, 0], sizes = [2, 32], strides = [1, 1]} : vector<2x64xf32> to vector<2x32xf32>
    %186 = arith.index_cast %c5_i32 : i32 to index
    %c0_59 = arith.constant 0 : index
    %c0_60 = arith.constant 0 : index
    %187 = vector.load %arg11[%186, %c0_59, %c0_60] : memref<8x2x32xf32, #tpu.memory_space<vmem>>, vector<1x2x32xf32>
    %188 = vector.shape_cast %187 : vector<1x2x32xf32> to vector<2x32xf32>
    %189 = vector.shape_cast %185 : vector<2x32xf32> to vector<1x2x32xf32>
    tpu.vector_store %arg11[%186, %c0_59, %c0_60], %189 {strides = array<i32>} : memref<8x2x32xf32, #tpu.memory_space<vmem>>, vector<1x2x32xf32>,
    %190 = vector.extract_strided_slice %184 {offsets = [0, 32], sizes = [2, 32], strides = [1, 1]} : vector<2x64xf32> to vector<2x32xf32>
    %c7_i32_61 = arith.constant 7 : i32
    %191 = arith.subi %c7_i32_61, %c5_i32 : i32
    %192 = arith.index_cast %191 : i32 to index
    %c0_62 = arith.constant 0 : index
    %c0_63 = arith.constant 0 : index
    %193 = vector.load %arg12[%192, %c0_62, %c0_63] : memref<8x2x32xf32, #tpu.memory_space<vmem>>, vector<1x2x32xf32>
    %194 = vector.shape_cast %193 : vector<1x2x32xf32> to vector<2x32xf32>
    %195 = vector.shape_cast %190 : vector<2x32xf32> to vector<1x2x32xf32>
    tpu.vector_store %arg12[%192, %c0_62, %c0_63], %195 {strides = array<i32>} : memref<8x2x32xf32, #tpu.memory_space<vmem>>, vector<1x2x32xf32>,
    %c6_i32 = arith.constant 6 : i32
    %c2_i32_64 = arith.constant 2 : i32
    %196 = arith.muli %c6_i32, %c2_i32_64 : i32
    %197 = arith.index_cast %196 : i32 to index
    %c0_65 = arith.constant 0 : index
    %198 = vector.load %arg10[%197, %c0_65] : memref<16x256xf32, #tpu.memory_space<vmem>>, vector<2x256xf32>
    %cst_66 = arith.constant dense<0.000000e+00> : vector<2x256xf32>
    %199 = tpu.matmul %184, %7, %cst_66 {dimension_numbers = #tpu.dot_dimension_numbers<[1], [0], [0], [1], [0, 0, 1, 1], [], []>} : vector<2x64xf32>, vector<64x256xf32>, vector<2x256xf32> -> vector<2x256xf32>
    %200 = arith.addf %198, %199 : vector<2x256xf32>
    %201 = arith.negf %200 : vector<2x256xf32>
    %202 = math.exp %201 : vector<2x256xf32>
    %cst_67 = arith.constant 1.000000e+00 : f32
    %203 = vector.broadcast %cst_67 : f32 to vector<2x256xf32>
    %204 = arith.addf %203, %202 : vector<2x256xf32>
    %205 = arith.divf %203, %204 : vector<2x256xf32>
    %206 = math.tanh %200 : vector<2x256xf32>
    %207 = vector.extract_strided_slice %205 {offsets = [0, 0], sizes = [2, 64], strides = [1, 1]} : vector<2x256xf32> to vector<2x64xf32>
    %208 = vector.extract_strided_slice %205 {offsets = [0, 64], sizes = [2, 64], strides = [1, 1]} : vector<2x256xf32> to vector<2x64xf32>
    %209 = vector.extract_strided_slice %206 {offsets = [0, 128], sizes = [2, 64], strides = [1, 1]} : vector<2x256xf32> to vector<2x64xf32>
    %210 = vector.extract_strided_slice %205 {offsets = [0, 192], sizes = [2, 64], strides = [1, 1]} : vector<2x256xf32> to vector<2x64xf32>
    %211 = arith.mulf %208, %182 : vector<2x64xf32>
    %212 = arith.mulf %207, %209 : vector<2x64xf32>
    %213 = arith.addf %211, %212 : vector<2x64xf32>
    %214 = math.tanh %213 : vector<2x64xf32>
    %215 = arith.mulf %210, %214 : vector<2x64xf32>
    %216 = vector.extract_strided_slice %215 {offsets = [0, 0], sizes = [2, 32], strides = [1, 1]} : vector<2x64xf32> to vector<2x32xf32>
    %217 = arith.index_cast %c6_i32 : i32 to index
    %c0_68 = arith.constant 0 : index
    %c0_69 = arith.constant 0 : index
    %218 = vector.load %arg11[%217, %c0_68, %c0_69] : memref<8x2x32xf32, #tpu.memory_space<vmem>>, vector<1x2x32xf32>
    %219 = vector.shape_cast %218 : vector<1x2x32xf32> to vector<2x32xf32>
    %220 = vector.shape_cast %216 : vector<2x32xf32> to vector<1x2x32xf32>
    tpu.vector_store %arg11[%217, %c0_68, %c0_69], %220 {strides = array<i32>} : memref<8x2x32xf32, #tpu.memory_space<vmem>>, vector<1x2x32xf32>,
    %221 = vector.extract_strided_slice %215 {offsets = [0, 32], sizes = [2, 32], strides = [1, 1]} : vector<2x64xf32> to vector<2x32xf32>
    %c7_i32_70 = arith.constant 7 : i32
    %222 = arith.subi %c7_i32_70, %c6_i32 : i32
    %223 = arith.index_cast %222 : i32 to index
    %c0_71 = arith.constant 0 : index
    %c0_72 = arith.constant 0 : index
    %224 = vector.load %arg12[%223, %c0_71, %c0_72] : memref<8x2x32xf32, #tpu.memory_space<vmem>>, vector<1x2x32xf32>
    %225 = vector.shape_cast %224 : vector<1x2x32xf32> to vector<2x32xf32>
    %226 = vector.shape_cast %221 : vector<2x32xf32> to vector<1x2x32xf32>
    tpu.vector_store %arg12[%223, %c0_71, %c0_72], %226 {strides = array<i32>} : memref<8x2x32xf32, #tpu.memory_space<vmem>>, vector<1x2x32xf32>,
    %c7_i32_73 = arith.constant 7 : i32
    %c2_i32_74 = arith.constant 2 : i32
    %227 = arith.muli %c7_i32_73, %c2_i32_74 : i32
    %228 = arith.index_cast %227 : i32 to index
    %c0_75 = arith.constant 0 : index
    %229 = vector.load %arg10[%228, %c0_75] : memref<16x256xf32, #tpu.memory_space<vmem>>, vector<2x256xf32>
    %cst_76 = arith.constant dense<0.000000e+00> : vector<2x256xf32>
    %230 = tpu.matmul %215, %7, %cst_76 {dimension_numbers = #tpu.dot_dimension_numbers<[1], [0], [0], [1], [0, 0, 1, 1], [], []>} : vector<2x64xf32>, vector<64x256xf32>, vector<2x256xf32> -> vector<2x256xf32>
    %231 = arith.addf %229, %230 : vector<2x256xf32>
    %232 = arith.negf %231 : vector<2x256xf32>
    %233 = math.exp %232 : vector<2x256xf32>
    %cst_77 = arith.constant 1.000000e+00 : f32
    %234 = vector.broadcast %cst_77 : f32 to vector<2x256xf32>
    %235 = arith.addf %234, %233 : vector<2x256xf32>
    %236 = arith.divf %234, %235 : vector<2x256xf32>
    %237 = math.tanh %231 : vector<2x256xf32>
    %238 = vector.extract_strided_slice %236 {offsets = [0, 0], sizes = [2, 64], strides = [1, 1]} : vector<2x256xf32> to vector<2x64xf32>
    %239 = vector.extract_strided_slice %236 {offsets = [0, 64], sizes = [2, 64], strides = [1, 1]} : vector<2x256xf32> to vector<2x64xf32>
    %240 = vector.extract_strided_slice %237 {offsets = [0, 128], sizes = [2, 64], strides = [1, 1]} : vector<2x256xf32> to vector<2x64xf32>
    %241 = vector.extract_strided_slice %236 {offsets = [0, 192], sizes = [2, 64], strides = [1, 1]} : vector<2x256xf32> to vector<2x64xf32>
    %242 = arith.mulf %239, %213 : vector<2x64xf32>
    %243 = arith.mulf %238, %240 : vector<2x64xf32>
    %244 = arith.addf %242, %243 : vector<2x64xf32>
    %245 = math.tanh %244 : vector<2x64xf32>
    %246 = arith.mulf %241, %245 : vector<2x64xf32>
    %247 = vector.extract_strided_slice %246 {offsets = [0, 0], sizes = [2, 32], strides = [1, 1]} : vector<2x64xf32> to vector<2x32xf32>
    %248 = arith.index_cast %c7_i32_73 : i32 to index
    %c0_78 = arith.constant 0 : index
    %c0_79 = arith.constant 0 : index
    %249 = vector.load %arg11[%248, %c0_78, %c0_79] : memref<8x2x32xf32, #tpu.memory_space<vmem>>, vector<1x2x32xf32>
    %250 = vector.shape_cast %249 : vector<1x2x32xf32> to vector<2x32xf32>
    %251 = vector.shape_cast %247 : vector<2x32xf32> to vector<1x2x32xf32>
    tpu.vector_store %arg11[%248, %c0_78, %c0_79], %251 {strides = array<i32>} : memref<8x2x32xf32, #tpu.memory_space<vmem>>, vector<1x2x32xf32>,
    %252 = vector.extract_strided_slice %246 {offsets = [0, 32], sizes = [2, 32], strides = [1, 1]} : vector<2x64xf32> to vector<2x32xf32>
    %c7_i32_80 = arith.constant 7 : i32
    %253 = arith.subi %c7_i32_80, %c7_i32_73 : i32
    %254 = arith.index_cast %253 : i32 to index
    %c0_81 = arith.constant 0 : index
    %c0_82 = arith.constant 0 : index
    %255 = vector.load %arg12[%254, %c0_81, %c0_82] : memref<8x2x32xf32, #tpu.memory_space<vmem>>, vector<1x2x32xf32>
    %256 = vector.shape_cast %255 : vector<1x2x32xf32> to vector<2x32xf32>
    %257 = vector.shape_cast %252 : vector<2x32xf32> to vector<1x2x32xf32>
    tpu.vector_store %arg12[%254, %c0_81, %c0_82], %257 {strides = array<i32>} : memref<8x2x32xf32, #tpu.memory_space<vmem>>, vector<1x2x32xf32>,
    %c8_i32 = arith.constant 8 : i32
    %c0_83 = arith.constant 0 : index
    %c0_84 = arith.constant 0 : index
    %c0_85 = arith.constant 0 : index
    %258 = vector.load %arg11[%c0_83, %c0_84, %c0_85] : memref<8x2x32xf32, #tpu.memory_space<vmem>>, vector<8x2x32xf32>
    %c0_86 = arith.constant 0 : index
    %c0_87 = arith.constant 0 : index
    %c0_88 = arith.constant 0 : index
    %259 = vector.load %arg12[%c0_86, %c0_87, %c0_88] : memref<8x2x32xf32, #tpu.memory_space<vmem>>, vector<8x2x32xf32>
    %c0_89 = arith.constant 0 : index
    %c0_90 = arith.constant 0 : index
    %260 = vector.load %arg5[%c0_89, %c0_90] : memref<64x8xf32, #tpu.memory_space<vmem>>, vector<64x8xf32>
    %c0_91 = arith.constant 0 : index
    %c0_92 = arith.constant 0 : index
    %261 = vector.load %arg6[%c0_91, %c0_92] : memref<1x8xf32, #tpu.memory_space<vmem>>, vector<1x8xf32>
    %262 = vector.extract_strided_slice %258 {offsets = [0, 0, 0], sizes = [8, 1, 32], strides = [1, 1, 1]} : vector<8x2x32xf32> to vector<8x1x32xf32>
    %263 = vector.shape_cast %262 : vector<8x1x32xf32> to vector<8x32xf32>
    %264 = vector.extract_strided_slice %259 {offsets = [0, 0, 0], sizes = [8, 1, 32], strides = [1, 1, 1]} : vector<8x2x32xf32> to vector<8x1x32xf32>
    %265 = vector.shape_cast %264 : vector<8x1x32xf32> to vector<8x32xf32>
    %266 = tpu.concatenate %263, %265 in 1 : vector<8x32xf32>, vector<8x32xf32> -> vector<8x64xf32>
    %cst_93 = arith.constant dense<0.000000e+00> : vector<8x8xf32>
    %267 = tpu.matmul %266, %260, %cst_93 {dimension_numbers = #tpu.dot_dimension_numbers<[1], [0], [0], [1], [0, 0, 1, 1], [], []>} : vector<8x64xf32>, vector<64x8xf32>, vector<8x8xf32> -> vector<8x8xf32>
    %268 = vector.broadcast %261 : vector<1x8xf32> to vector<8x8xf32>
    %269 = arith.addf %267, %268 : vector<8x8xf32>
    %270 = math.tanh %269 : vector<8x8xf32>
    %cst_94 = arith.constant dense<0xFF800000> : vector<8xf32>
    %271 = vector.multi_reduction <maximumf>, %270, %cst_94 [0] : vector<8x8xf32> to vector<8xf32>
    %272 = vector.shape_cast %271 : vector<8xf32> to vector<1x8xf32>
    %273 = vector.broadcast %272 : vector<1x8xf32> to vector<8x8xf32>
    %274 = arith.subf %270, %273 : vector<8x8xf32>
    %275 = math.exp %274 : vector<8x8xf32>
    %cst_95 = arith.constant dense<0.000000e+00> : vector<8xf32>
    %276 = vector.multi_reduction <add>, %275, %cst_95 [0] : vector<8x8xf32> to vector<8xf32>
    %277 = vector.shape_cast %276 : vector<8xf32> to vector<1x8xf32>
    %278 = tpu.reciprocal %277 {approx = true} : vector<1x8xf32> -> vector<1x8xf32>
    %279 = vector.broadcast %278 : vector<1x8xf32> to vector<8x8xf32>
    %280 = arith.mulf %275, %279 : vector<8x8xf32>
    %cst_96 = arith.constant dense<0.000000e+00> : vector<8x64xf32>
    %281 = tpu.matmul %280, %266, %cst_96 {dimension_numbers = #tpu.dot_dimension_numbers<[1], [0], [0], [1], [0, 0, 1, 1], [], []>} : vector<8x8xf32>, vector<8x64xf32>, vector<8x64xf32> -> vector<8x64xf32>
    %282 = vector.shape_cast %281 : vector<8x64xf32> to vector<8x1x64xf32>
    %c0_97 = arith.constant 0 : index
    %c0_98 = arith.constant 0 : index
    %c0_99 = arith.constant 0 : index
    %283 = vector.load %arg13[%c0_97, %c0_98, %c0_99] : memref<8x2x64xf32, #tpu.memory_space<vmem>>, vector<8x1x64xf32>
    tpu.vector_store %arg13[%c0_97, %c0_98, %c0_99], %282 {strides = array<i32>} : memref<8x2x64xf32, #tpu.memory_space<vmem>>, vector<8x1x64xf32>,
    %284 = vector.extract_strided_slice %258 {offsets = [0, 1, 0], sizes = [8, 1, 32], strides = [1, 1, 1]} : vector<8x2x32xf32> to vector<8x1x32xf32>
    %285 = vector.shape_cast %284 : vector<8x1x32xf32> to vector<8x32xf32>
    %286 = vector.extract_strided_slice %259 {offsets = [0, 1, 0], sizes = [8, 1, 32], strides = [1, 1, 1]} : vector<8x2x32xf32> to vector<8x1x32xf32>
    %287 = vector.shape_cast %286 : vector<8x1x32xf32> to vector<8x32xf32>
    %288 = tpu.concatenate %285, %287 in 1 : vector<8x32xf32>, vector<8x32xf32> -> vector<8x64xf32>
    %cst_100 = arith.constant dense<0.000000e+00> : vector<8x8xf32>
    %289 = tpu.matmul %288, %260, %cst_100 {dimension_numbers = #tpu.dot_dimension_numbers<[1], [0], [0], [1], [0, 0, 1, 1], [], []>} : vector<8x64xf32>, vector<64x8xf32>, vector<8x8xf32> -> vector<8x8xf32>
    %290 = vector.broadcast %261 : vector<1x8xf32> to vector<8x8xf32>
    %291 = arith.addf %289, %290 : vector<8x8xf32>
    %292 = math.tanh %291 : vector<8x8xf32>
    %cst_101 = arith.constant dense<0xFF800000> : vector<8xf32>
    %293 = vector.multi_reduction <maximumf>, %292, %cst_101 [0] : vector<8x8xf32> to vector<8xf32>
    %294 = vector.shape_cast %293 : vector<8xf32> to vector<1x8xf32>
    %295 = vector.broadcast %294 : vector<1x8xf32> to vector<8x8xf32>
    %296 = arith.subf %292, %295 : vector<8x8xf32>
    %297 = math.exp %296 : vector<8x8xf32>
    %cst_102 = arith.constant dense<0.000000e+00> : vector<8xf32>
    %298 = vector.multi_reduction <add>, %297, %cst_102 [0] : vector<8x8xf32> to vector<8xf32>
    %299 = vector.shape_cast %298 : vector<8xf32> to vector<1x8xf32>
    %300 = tpu.reciprocal %299 {approx = true} : vector<1x8xf32> -> vector<1x8xf32>
    %301 = vector.broadcast %300 : vector<1x8xf32> to vector<8x8xf32>
    %302 = arith.mulf %297, %301 : vector<8x8xf32>
    %cst_103 = arith.constant dense<0.000000e+00> : vector<8x64xf32>
    %303 = tpu.matmul %302, %288, %cst_103 {dimension_numbers = #tpu.dot_dimension_numbers<[1], [0], [0], [1], [0, 0, 1, 1], [], []>} : vector<8x8xf32>, vector<8x64xf32>, vector<8x64xf32> -> vector<8x64xf32>
    %304 = vector.shape_cast %303 : vector<8x64xf32> to vector<8x1x64xf32>
    %c0_104 = arith.constant 0 : index
    %c1 = arith.constant 1 : index
    %c0_105 = arith.constant 0 : index
    %305 = vector.load %arg13[%c0_104, %c1, %c0_105] : memref<8x2x64xf32, #tpu.memory_space<vmem>>, vector<8x1x64xf32>
    tpu.vector_store %arg13[%c0_104, %c1, %c0_105], %304 {strides = array<i32>} : memref<8x2x64xf32, #tpu.memory_space<vmem>>, vector<8x1x64xf32>,
    %c0_106 = arith.constant 0 : index
    %c0_107 = arith.constant 0 : index
    %c0_108 = arith.constant 0 : index
    %306 = vector.load %arg13[%c0_106, %c0_107, %c0_108] : memref<8x2x64xf32, #tpu.memory_space<vmem>>, vector<8x2x64xf32>
    %c0_109 = arith.constant 0 : index
    %c0_110 = arith.constant 0 : index
    %c0_111 = arith.constant 0 : index
    %307 = vector.load %arg7[%c0_109, %c0_110, %c0_111] : memref<8x64x4xf32, #tpu.memory_space<vmem>>, vector<8x64x4xf32>
    %cst_112 = arith.constant dense<0.000000e+00> : vector<8x2x4xf32>
    %308 = tpu.matmul %306, %307, %cst_112 {dimension_numbers = #tpu.dot_dimension_numbers<[2], [1], [1], [2], [0, 0, 0, 1, 1, 2], [0], [0]>} : vector<8x2x64xf32>, vector<8x64x4xf32>, vector<8x2x4xf32> -> vector<8x2x4xf32>
    %cst_113 = arith.constant dense<0.000000e+00> : vector<2x4xf32>
    %309 = vector.multi_reduction <add>, %308, %cst_113 [0] : vector<8x2x4xf32> to vector<2x4xf32>
    %c0_114 = arith.constant 0 : index
    %c0_115 = arith.constant 0 : index
    %310 = vector.load %arg8[%c0_114, %c0_115] : memref<1x4xf32, #tpu.memory_space<vmem>>, vector<1x4xf32>
    %311 = vector.broadcast %310 : vector<1x4xf32> to vector<2x4xf32>
    %312 = arith.addf %309, %311 : vector<2x4xf32>
    %313 = arith.negf %312 : vector<2x4xf32>
    %314 = math.exp %313 : vector<2x4xf32>
    %cst_116 = arith.constant 1.000000e+00 : f32
    %315 = vector.broadcast %cst_116 : f32 to vector<2x4xf32>
    %316 = arith.addf %315, %314 : vector<2x4xf32>
    %317 = arith.divf %315, %316 : vector<2x4xf32>
    %c0_117 = arith.constant 0 : index
    %c0_118 = arith.constant 0 : index
    %318 = vector.load %arg9[%c0_117, %c0_118] : memref<2x4xf32, #tpu.memory_space<vmem>>, vector<2x4xf32>
    tpu.vector_store %arg9[%c0_117, %c0_118], %317 {strides = array<i32>} : memref<2x4xf32, #tpu.memory_space<vmem>>, vector<2x4xf32>,
    return
  }
  func.func @transform_0(%arg0: i32) -> (i32, i32) {
    %c0_i32 = arith.constant 0 : i32
    %c0_i32_0 = arith.constant 0 : i32
    %c0_i32_1 = arith.constant 0 : i32
    return %c0_i32, %c0_i32_0 : i32, i32
  }
  func.func @transform_1(%arg0: i32) -> (i32, i32) {
    %c0_i32 = arith.constant 0 : i32
    %c0_i32_0 = arith.constant 0 : i32
    %c0_i32_1 = arith.constant 0 : i32
    return %c0_i32, %c0_i32_0 : i32, i32
  }
  func.func @transform_2(%arg0: i32) -> (i32, i32) {
    %c0_i32 = arith.constant 0 : i32
    %c0_i32_0 = arith.constant 0 : i32
    %c0_i32_1 = arith.constant 0 : i32
    return %c0_i32, %c0_i32_0 : i32, i32
  }
  func.func @transform_3(%arg0: i32) -> (i32, i32) {
    %c0_i32 = arith.constant 0 : i32
    %c0_i32_0 = arith.constant 0 : i32
    %c0_i32_1 = arith.constant 0 : i32
    return %c0_i32, %c0_i32_0 : i32, i32
  }
  func.func @transform_4(%arg0: i32) -> (i32, i32) {
    %c0_i32 = arith.constant 0 : i32
    %c0_i32_0 = arith.constant 0 : i32
    %c0_i32_1 = arith.constant 0 : i32
    return %c0_i32, %c0_i32_0 : i32, i32
  }
  func.func @transform_5(%arg0: i32) -> (i32, i32) {
    %c0_i32 = arith.constant 0 : i32
    %c0_i32_0 = arith.constant 0 : i32
    %c0_i32_1 = arith.constant 0 : i32
    return %c0_i32, %c0_i32_0 : i32, i32
  }
  func.func @transform_6(%arg0: i32) -> (i32, i32, i32) {
    %c0_i32 = arith.constant 0 : i32
    %c0_i32_0 = arith.constant 0 : i32
    %c0_i32_1 = arith.constant 0 : i32
    %c0_i32_2 = arith.constant 0 : i32
    return %c0_i32, %c0_i32_0, %c0_i32_1 : i32, i32, i32
  }
  func.func @transform_7(%arg0: i32) -> (i32, i32) {
    %c0_i32 = arith.constant 0 : i32
    %c0_i32_0 = arith.constant 0 : i32
    %c0_i32_1 = arith.constant 0 : i32
    return %c0_i32, %c0_i32_0 : i32, i32
  }
  func.func @transform_8(%arg0: i32) -> (i32, i32) {
    %c0_i32 = arith.constant 0 : i32
    %c0_i32_0 = arith.constant 0 : i32
    %c0_i32_1 = arith.constant 0 : i32
    return %c0_i32, %c0_i32_0 : i32, i32
  }
}

</mosaic_0001>

<llo_original>
// kernel: bilstm_model_forward.1
$region0: #{bilstm_model_forward.1}
  #allocation0 [shape = 'u32[]', space=smem, size = 0x4, offset = 0x4, fixed_abs, tag = 'smem constant byte address 0x4 - core index']
  #allocation1 [shape = 'u32[72,128]{1,0:T(1,128)}', space=vmem, size = 0x9000, scoped, tag = 'internal scratch']
  #allocation2 [shape = 'f32[16,256]{1,0:T(8,128)}', space=vmem, size = 0x4000, scoped, tag = 'scratch operand']
  #allocation3 [shape = 'f32[8,2,32]{2,1,0:T(2,128)}', space=vmem, size = 0x2000, scoped, tag = 'scratch operand']
  #allocation4 [shape = 'f32[8,2,32]{2,1,0:T(2,128)}', space=vmem, size = 0x2000, scoped, tag = 'scratch operand']
  #allocation5 [shape = 'f32[8,2,64]{2,1,0:T(2,128)}', space=vmem, size = 0x2000, scoped, tag = 'scratch operand']
  %s0 = inlined_call_operand.vmem [shape: f32[16,32], index: 0, kind: input, shape index: {}]
  %s1 = inlined_call_operand.vmem [shape: f32[32,256], index: 1, kind: input, shape index: {}]
  %s2 = inlined_call_operand.vmem [shape: f32[64,256], index: 2, kind: input, shape index: {}]
  %s3 = inlined_call_operand.vmem [shape: f32[1,256], index: 3, kind: input, shape index: {}]
  %s4 = inlined_call_operand.vmem [shape: f32[64,8], index: 4, kind: input, shape index: {}]
  %s5 = inlined_call_operand.vmem [shape: f32[1,8], index: 5, kind: input, shape index: {}]
  %s6 = inlined_call_operand.vmem [shape: f32[8,64,4], index: 6, kind: input, shape index: {}]
  %s7 = inlined_call_operand.vmem [shape: f32[1,4], index: 7, kind: input, shape index: {}]
  %s8 = inlined_call_operand.hbm [shape: f32[2,4], index: 8, kind: output, shape index: {}]
  %s9 = sld [smem:[#allocation0]]
  $region42: #{bilstm_model_forward.1} parent=0
    _
  %s11 = ssub.s32 1, %s9
  %s12 = scalar_select 0, %s11, %s9
  $region1: #{bilstm_model_forward.1} parent=0
    #allocation6 [shape = 'u8[1024]{0}', space=vmem, size = 0x400, scoped, tag = 'output window, operand 0, single buffered']
    #allocation7 [shape = 's32[1]{0}', space=sflag, size = 0x4, scoped, tag = 'scoped memory for bilstm_model_forward.1']
    %13 = vsyncpa [#allocation7], 0
    // Predicated region
    $region2: #{bilstm_model_forward.1} parent=1 // pred_check
      _
    $region3: #{bilstm_model_forward.1} parent=1 // pred_check_branch
      %15 = sbr.rel (0) target = $region5
    $region4: #{bilstm_model_forward.1} parent=1 // pred_region
      _
    $region5: #{bilstm_model_forward.1} parent=1 // pred_fallthru
      _
    // Predicated region
    $region6: #{bilstm_model_forward.1} parent=1 // pred_check
      _
    $region7: #{bilstm_model_forward.1} parent=1 // pred_check_branch
      %17 = sbr.rel (0) target = $region9
    $region8: #{bilstm_model_forward.1} parent=1 // pred_region
      _
    $region9: #{bilstm_model_forward.1} parent=1 // pred_fallthru
      _
    // Predicated region
    $region10: #{bilstm_model_forward.1} parent=1 // pred_check
      _
    $region11: #{bilstm_model_forward.1} parent=1 // pred_check_branch
      %19 = sbr.rel (0) target = $region13
    $region12: #{bilstm_model_forward.1} parent=1 // pred_region
      _
    $region13: #{bilstm_model_forward.1} parent=1 // pred_fallthru
      _
    // Predicated region
    $region14: #{bilstm_model_forward.1} parent=1 // pred_check
      _
    $region15: #{bilstm_model_forward.1} parent=1 // pred_check_branch
      %21 = sbr.rel (0) target = $region17
    $region16: #{bilstm_model_forward.1} parent=1 // pred_region
      _
    $region17: #{bilstm_model_forward.1} parent=1 // pred_fallthru
      _
    // Predicated region
    $region18: #{bilstm_model_forward.1} parent=1 // pred_check
      _
    $region19: #{bilstm_model_forward.1} parent=1 // pred_check_branch
      %23 = sbr.rel (0) target = $region21
    $region20: #{bilstm_model_forward.1} parent=1 // pred_region
      _
    $region21: #{bilstm_model_forward.1} parent=1 // pred_fallthru
      _
    // Predicated region
    $region22: #{bilstm_model_forward.1} parent=1 // pred_check
      _
    $region23: #{bilstm_model_forward.1} parent=1 // pred_check_branch
      %25 = sbr.rel (0) target = $region25
    $region24: #{bilstm_model_forward.1} parent=1 // pred_region
      _
    $region25: #{bilstm_model_forward.1} parent=1 // pred_fallthru
      _
    // Predicated region
    $region26: #{bilstm_model_forward.1} parent=1 // pred_check
      _
    $region27: #{bilstm_model_forward.1} parent=1 // pred_check_branch
      %27 = sbr.rel (0) target = $region29
    $region28: #{bilstm_model_forward.1} parent=1 // pred_region
      _
    $region29: #{bilstm_model_forward.1} parent=1 // pred_fallthru
      _
    // Predicated region
    $region30: #{bilstm_model_forward.1} parent=1 // pred_check
      _
    $region31: #{bilstm_model_forward.1} parent=1 // pred_check_branch
      %29 = sbr.rel (0) target = $region33
    $region32: #{bilstm_model_forward.1} parent=1 // pred_region
      _
    $region33: #{bilstm_model_forward.1} parent=1 // pred_fallthru
      _
    %v30 = vld [vmem:[%s0] sm:$0xff]
    %v31 = vld [vmem:[%s0 + $0x8] sm:$0xff]
    %v32 = vld [vmem:[%s1] sm:$0xff]
    %v33 = vld [vmem:[%s1 + $0x8] sm:$0xff]
    %v34 = vld [vmem:[%s1 + $0x10] sm:$0xff]
    %v35 = vld [vmem:[%s1 + $0x18] sm:$0xff]
    %v36 = vld [vmem:[%s1 + $0x20] sm:$0xff]
    %v37 = vld [vmem:[%s1 + $0x28] sm:$0xff]
    %v38 = vld [vmem:[%s1 + $0x30] sm:$0xff]
    %v39 = vld [vmem:[%s1 + $0x38] sm:$0xff]
    %v40 = vld [vmem:[%s3] sm:$0x3]
    %v42 = vperm.slane %v40, 0
    %v43 = vperm.slane %v40, 1
    %vm46 = vcmask 261120
    %v48 = vsel %vm46, %v30, 0
    %v51 = vsel %vm46, %v31, 0
    %53 = vmatpush.msra.mxu0 0.0
    %54 = vmatpush.msra.mxu0 0.0
    %55 = vmatpush.msra.mxu0 0.0
    %56 = vmatpush.msra.mxu0 0.0
    %57 = vmatpush.msra.mxu0 0.0
    %58 = vmatpush.msra.mxu0 0.0
    %59 = vmatpush.msra.mxu0 0.0
    %60 = vmatpush.msra.mxu0 0.0
    %61 = vmatpush.msra.mxu0 0.0
    %62 = vmatpush.msra.mxu0 0.0
    %63 = vmatpush.msra.mxu0 0.0
    %64 = vmatpush.msra.mxu0 0.0
    %65 = vmatpush.msra.mxu0 %v38
    %66 = vmatpush.msra.mxu0 %v36
    %67 = vmatpush.msra.mxu0 %v34
    %68 = vmatpush.msra.mxu0 %v32
    %69 = vmatmul.f32.gmra.mxu0 %v48
    %v70 = vpop.f32.mrf.mxu0
    %v71 = vadd.f32 %v42, %v70
    %72 = vmatmul.f32.gmra.mxu0 %v51
    %v73 = vpop.f32.mrf.mxu0
    %v74 = vadd.f32 %v42, %v73
    %75 = vdwg.mxu0
    %76 = vmatpush.msra.mxu0 0.0
    %77 = vmatpush.msra.mxu0 0.0
    %78 = vmatpush.msra.mxu0 0.0
    %79 = vmatpush.msra.mxu0 0.0
    %80 = vmatpush.msra.mxu0 0.0
    %81 = vmatpush.msra.mxu0 0.0
    %82 = vmatpush.msra.mxu0 0.0
    %83 = vmatpush.msra.mxu0 0.0
    %84 = vmatpush.msra.mxu0 0.0
    %85 = vmatpush.msra.mxu0 0.0
    %86 = vmatpush.msra.mxu0 0.0
    %87 = vmatpush.msra.mxu0 0.0
    %88 = vmatpush.msra.mxu0 %v39
    %89 = vmatpush.msra.mxu0 %v37
    %90 = vmatpush.msra.mxu0 %v35
    %91 = vmatpush.msra.mxu0 %v33
    %92 = vmatmul.f32.gmra.mxu0 %v48
    %v93 = vpop.f32.mrf.mxu0
    %v94 = vadd.f32 %v43, %v93
    %95 = vmatmul.f32.gmra.mxu0 %v51
    %v96 = vpop.f32.mrf.mxu0
    %v97 = vadd.f32 %v43, %v96
    %98 = vdwg.mxu0
    %99 = vst [vmem:[#allocation2] sm:$0xff] %v71
    %100 = vst [vmem:[#allocation2 + $0x8] sm:$0xff] %v94
    %101 = vst [vmem:[#allocation2 + $0x10] sm:$0xff] %v74
    %102 = vst [vmem:[#allocation2 + $0x18] sm:$0xff] %v97
    %v103 = vld [vmem:[%s2] sm:$0xff]
    %v104 = vld [vmem:[%s2 + $0x8] sm:$0xff]
    %v105 = vld [vmem:[%s2 + $0x10] sm:$0xff]
    %v106 = vld [vmem:[%s2 + $0x18] sm:$0xff]
    %v107 = vld [vmem:[%s2 + $0x20] sm:$0xff]
    %v108 = vld [vmem:[%s2 + $0x28] sm:$0xff]
    %v109 = vld [vmem:[%s2 + $0x30] sm:$0xff]
    %v110 = vld [vmem:[%s2 + $0x38] sm:$0xff]
    %v111 = vld [vmem:[%s2 + $0x40] sm:$0xff]
    %v112 = vld [vmem:[%s2 + $0x48] sm:$0xff]
    %v113 = vld [vmem:[%s2 + $0x50] sm:$0xff]
    %v114 = vld [vmem:[%s2 + $0x58] sm:$0xff]
    %v115 = vld [vmem:[%s2 + $0x60] sm:$0xff]
    %v116 = vld [vmem:[%s2 + $0x68] sm:$0xff]
    %v117 = vld [vmem:[%s2 + $0x70] sm:$0xff]
    %v118 = vld [vmem:[%s2 + $0x78] sm:$0xff]
    %v119 = vld [vmem:[#allocation2] sm:$0x3]
    %v120 = vld [vmem:[#allocation2 + $0x8] sm:$0x3]
    %vm121 = vcmask 523264
    %v123 = vsel %vm121, 0.0, 0
    %125 = vmatpush.msra.mxu0 0.0
    %126 = vmatpush.msra.mxu0 0.0
    %127 = vmatpush.msra.mxu0 0.0
    %128 = vmatpush.msra.mxu0 0.0
    %129 = vmatpush.msra.mxu0 0.0
    %130 = vmatpush.msra.mxu0 0.0
    %131 = vmatpush.msra.mxu0 0.0
    %132 = vmatpush.msra.mxu0 0.0
    %133 = vmatpush.msra.mxu0 %v117
    %134 = vmatpush.msra.mxu0 %v115
    %135 = vmatpush.msra.mxu0 %v113
    %136 = vmatpush.msra.mxu0 %v111
    %137 = vmatpush.msra.mxu0 %v109
    %138 = vmatpush.msra.mxu0 %v107
    %139 = vmatpush.msra.mxu0 %v105
    %140 = vmatpush.msra.mxu0 %v103
    %141 = vmatmul.f32.gmra.mxu0 %v123
    %v142 = vpop.f32.mrf.mxu0
    %v143 = vadd.f32 0.0, %v142
    %144 = vdwg.mxu0
    %145 = vmatpush.msra.mxu0 0.0
    %146 = vmatpush.msra.mxu0 0.0
    %147 = vmatpush.msra.mxu0 0.0
    %148 = vmatpush.msra.mxu0 0.0
    %149 = vmatpush.msra.mxu0 0.0
    %150 = vmatpush.msra.mxu0 0.0
    %151 = vmatpush.msra.mxu0 0.0
    %152 = vmatpush.msra.mxu0 0.0
    %153 = vmatpush.msra.mxu0 %v118
    %154 = vmatpush.msra.mxu0 %v116
    %155 = vmatpush.msra.mxu0 %v114
    %156 = vmatpush.msra.mxu0 %v112
    %157 = vmatpush.msra.mxu0 %v110
    %158 = vmatpush.msra.mxu0 %v108
    %159 = vmatpush.msra.mxu0 %v106
    %160 = vmatpush.msra.mxu0 %v104
    %161 = vmatmul.f32.gmra.mxu0 %v123
    %v162 = vpop.f32.mrf.mxu0
    %v163 = vadd.f32 0.0, %v162
    %164 = vdwg.mxu0
    %v165 = vadd.f32 %v119, %v143
    %v166 = vadd.f32 %v120, %v163
    %v167 = vxor.u32 %v165, 2147483648
    %v168 = vxor.u32 %v166, 2147483648
    %v169 = vmul.f32 %v167, 1.442695
    %v170 = vpow.pop %v169
    %v171 = vmul.f32 %v168, 1.442695
    %v172 = vpow.pop %v171
    %v173 = vadd.f32 %v170, 1.0
    %v174 = vadd.f32 %v172, 1.0
    %v175 = vrcp.pop %v173
    %v176 = vmul.f32 %v173, %v175
    %v177 = vsub.f32 1.0, %v176
    %v178 = vmul.f32 %v175, %v177
    %v179 = vadd.f32 %v175, %v178
    %vm180 = vweird.f32 %v173
    %vm181 = vweird.f32 %v175
    %vm182 = vmor %vm180, %vm181
    %v183 = vsel %vm182, %v175, %v179
    %v184 = vand.u32 2147483647, %v173
    %vm185 = vcmp.eq.f32.partialorder %v184, 8.507059e+37
    %v186 = vand.u32 %v173, 2147483648
    %v187 = vor.u32 1.1754944e-38, %v186
    %v188 = vsel %vm185, %v187, %v183
    %v189 = vmul.f32 1.0, %v188
    %v190 = vrcp.pop %v174
    %v191 = vmul.f32 %v174, %v190
    %v192 = vsub.f32 1.0, %v191
    %v193 = vmul.f32 %v190, %v192
    %v194 = vadd.f32 %v190, %v193
    %vm195 = vweird.f32 %v174
    %vm196 = vweird.f32 %v190
    %vm197 = vmor %vm195, %vm196
    %v198 = vsel %vm197, %v190, %v194
    %v199 = vand.u32 2147483647, %v174
    %vm200 = vcmp.eq.f32.partialorder %v199, 8.507059e+37
    %v201 = vand.u32 %v174, 2147483648
    %v202 = vor.u32 1.1754944e-38, %v201
    %v203 = vsel %vm200, %v202, %v198
    %v204 = vmul.f32 1.0, %v203
    %v205 = vtanh.pop %v166
    %v206 = vmul.f32 %v189, 0.0
    %v207 = vmul.f32 %v189, %v205
    %209 = vrot.lane.b32.xlu0 %v207, 64
    %v210 = vpop.permute.xlu0 %209
    %v212 = vadd.f32 %v206, %v210
    %v213 = vtanh.pop %v212
    %v214 = vmul.f32 %v204, %v213
    %216 = vrot.lane.b32.xlu0 %v214, 64
    %v217 = vpop.permute.xlu0 %216
    %vm219 = vcmask 254976
    %220 = vst.msk [vmem:[#allocation3] sm:$0x3] %vm219, %v217
    %221 = vrot.lane.b32.xlu0 %v214, 32
    %v222 = vpop.permute.xlu0 %221
    %s224 = scalar_lea.vmem [#allocation4], 14
    %225 = vst.msk [vmem:[%s224] sm:$0x3] %vm219, %v222
    %v226 = vld [vmem:[#allocation2] sm:$0xc]
    %v227 = vld [vmem:[#allocation2 + $0x8] sm:$0xc]
    %v228 = vsel %vm121, %v217, 0
    %230 = vmatpush.msra.mxu0 0.0
    %231 = vmatpush.msra.mxu0 0.0
    %232 = vmatpush.msra.mxu0 0.0
    %233 = vmatpush.msra.mxu0 0.0
    %234 = vmatpush.msra.mxu0 0.0
    %235 = vmatpush.msra.mxu0 0.0
    %236 = vmatpush.msra.mxu0 0.0
    %237 = vmatpush.msra.mxu0 0.0
    %238 = vmatpush.msra.mxu0 %v117
    %239 = vmatpush.msra.mxu0 %v115
    %240 = vmatpush.msra.mxu0 %v113
    %241 = vmatpush.msra.mxu0 %v111
    %242 = vmatpush.msra.mxu0 %v109
    %243 = vmatpush.msra.mxu0 %v107
    %244 = vmatpush.msra.mxu0 %v105
    %245 = vmatpush.msra.mxu0 %v103
    %246 = vmatmul.f32.gmra.mxu0 %v228
    %v247 = vpop.f32.mrf.mxu0
    %v248 = vadd.f32 0.0, %v247
    %249 = vdwg.mxu0
    %250 = vmatpush.msra.mxu0 0.0
    %251 = vmatpush.msra.mxu0 0.0
    %252 = vmatpush.msra.mxu0 0.0
    %253 = vmatpush.msra.mxu0 0.0
    %254 = vmatpush.msra.mxu0 0.0
    %255 = vmatpush.msra.mxu0 0.0
    %256 = vmatpush.msra.mxu0 0.0
    %257 = vmatpush.msra.mxu0 0.0
    %258 = vmatpush.msra.mxu0 %v118
    %259 = vmatpush.msra.mxu0 %v116
    %260 = vmatpush.msra.mxu0 %v114
    %261 = vmatpush.msra.mxu0 %v112
    %262 = vmatpush.msra.mxu0 %v110
    %263 = vmatpush.msra.mxu0 %v108
    %264 = vmatpush.msra.mxu0 %v106
    %265 = vmatpush.msra.mxu0 %v104
    %266 = vmatmul.f32.gmra.mxu0 %v228
    %v267 = vpop.f32.mrf.mxu0
    %v268 = vadd.f32 0.0, %v267
    %269 = vdwg.mxu0
    %v272 = vrot.slane %v248, 6
    %v273 = vrot.slane %v268, 6
    %v276 = vadd.f32 %v226, %v272
    %v277 = vadd.f32 %v227, %v273
    %v278 = vxor.u32 %v276, 2147483648
    %v279 = vxor.u32 %v277, 2147483648
    %v280 = vmul.f32 %v278, 1.442695
    %v281 = vpow.pop %v280
    %v282 = vmul.f32 %v279, 1.442695
    %v283 = vpow.pop %v282
    %v284 = vadd.f32 %v281, 1.0
    %v285 = vadd.f32 %v283, 1.0
    %v286 = vrcp.pop %v284
    %v287 = vmul.f32 %v284, %v286
    %v288 = vsub.f32 1.0, %v287
    %v289 = vmul.f32 %v286, %v288
    %v290 = vadd.f32 %v286, %v289
    %vm291 = vweird.f32 %v284
    %vm292 = vweird.f32 %v286
    %vm293 = vmor %vm291, %vm292
    %v294 = vsel %vm293, %v286, %v290
    %v295 = vand.u32 2147483647, %v284
    %vm296 = vcmp.eq.f32.partialorder %v295, 8.507059e+37
    %v297 = vand.u32 %v284, 2147483648
    %v298 = vor.u32 1.1754944e-38, %v297
    %v299 = vsel %vm296, %v298, %v294
    %v300 = vmul.f32 1.0, %v299
    %v301 = vrcp.pop %v285
    %v302 = vmul.f32 %v285, %v301
    %v303 = vsub.f32 1.0, %v302
    %v304 = vmul.f32 %v301, %v303
    %v305 = vadd.f32 %v301, %v304
    %vm306 = vweird.f32 %v285
    %vm307 = vweird.f32 %v301
    %vm308 = vmor %vm306, %vm307
    %v309 = vsel %vm308, %v301, %v305
    %v310 = vand.u32 2147483647, %v285
    %vm311 = vcmp.eq.f32.partialorder %v310, 8.507059e+37
    %v312 = vand.u32 %v285, 2147483648
    %v313 = vor.u32 1.1754944e-38, %v312
    %v314 = vsel %vm311, %v313, %v309
    %v315 = vmul.f32 1.0, %v314
    %v316 = vtanh.pop %v277
    %v318 = vrot.slane %v212, 6
    %v320 = vmul.f32 %v300, %v318
    %v321 = vmul.f32 %v300, %v316
    %323 = vrot.lane.b32.xlu0 %v321, 64
    %v324 = vpop.permute.xlu0 %323
    %v326 = vadd.f32 %v320, %v324
    %v327 = vtanh.pop %v326
    %v328 = vmul.f32 %v315, %v327
    %330 = vrot.lane.b32.xlu0 %v328, 64
    %v331 = vpop.permute.xlu0 %330
    %s333 = scalar_lea.vmem [#allocation3], 2
    %vm334 = vcmask 257026
    %335 = vst.msk [vmem:[%s333 - $0x2] sm:$0xc] %vm334, %v331
    %336 = vrot.lane.b32.xlu0 %v328, 32
    %v337 = vpop.permute.xlu0 %336
    %s339 = scalar_lea.vmem [#allocation4], 12
    %340 = vst.msk [vmem:[%s339 - $0x2] sm:$0xc] %vm334, %v337
    %v341 = vld [vmem:[#allocation2] sm:$0x30]
    %v342 = vld [vmem:[#allocation2 + $0x8] sm:$0x30]
    %v343 = vrot.slane %v328, 2
    %344 = vrot.lane.b32.xlu0 %v343, 64
    %v345 = vpop.permute.xlu0 %344
    %v346 = vsel %vm121, %v345, 0
    %348 = vmatpush.msra.mxu0 0.0
    %349 = vmatpush.msra.mxu0 0.0
    %350 = vmatpush.msra.mxu0 0.0
    %351 = vmatpush.msra.mxu0 0.0
    %352 = vmatpush.msra.mxu0 0.0
    %353 = vmatpush.msra.mxu0 0.0
    %354 = vmatpush.msra.mxu0 0.0
    %355 = vmatpush.msra.mxu0 0.0
    %356 = vmatpush.msra.mxu0 %v117
    %357 = vmatpush.msra.mxu0 %v115
    %358 = vmatpush.msra.mxu0 %v113
    %359 = vmatpush.msra.mxu0 %v111
    %360 = vmatpush.msra.mxu0 %v109
    %361 = vmatpush.msra.mxu0 %v107
    %362 = vmatpush.msra.mxu0 %v105
    %363 = vmatpush.msra.mxu0 %v103
    %364 = vmatmul.f32.gmra.mxu0 %v346
    %v365 = vpop.f32.mrf.mxu0
    %v366 = vadd.f32 0.0, %v365
    %367 = vdwg.mxu0
    %368 = vmatpush.msra.mxu0 0.0
    %369 = vmatpush.msra.mxu0 0.0
    %370 = vmatpush.msra.mxu0 0.0
    %371 = vmatpush.msra.mxu0 0.0
    %372 = vmatpush.msra.mxu0 0.0
    %373 = vmatpush.msra.mxu0 0.0
    %374 = vmatpush.msra.mxu0 0.0
    %375 = vmatpush.msra.mxu0 0.0
    %376 = vmatpush.msra.mxu0 %v118
    %377 = vmatpush.msra.mxu0 %v116
    %378 = vmatpush.msra.mxu0 %v114
    %379 = vmatpush.msra.mxu0 %v112
    %380 = vmatpush.msra.mxu0 %v110
    %381 = vmatpush.msra.mxu0 %v108
    %382 = vmatpush.msra.mxu0 %v106
    %383 = vmatpush.msra.mxu0 %v104
    %384 = vmatmul.f32.gmra.mxu0 %v346
    %v385 = vpop.f32.mrf.mxu0
    %v386 = vadd.f32 0.0, %v385
    %387 = vdwg.mxu0
    %v390 = vrot.slane %v366, 4
    %v391 = vrot.slane %v386, 4
    %v394 = vadd.f32 %v341, %v390
    %v395 = vadd.f32 %v342, %v391
    %v396 = vxor.u32 %v394, 2147483648
    %v397 = vxor.u32 %v395, 2147483648
    %v398 = vmul.f32 %v396, 1.442695
    %v399 = vpow.pop %v398
    %v400 = vmul.f32 %v397, 1.442695
    %v401 = vpow.pop %v400
    %v402 = vadd.f32 %v399, 1.0
    %v403 = vadd.f32 %v401, 1.0
    %v404 = vrcp.pop %v402
    %v405 = vmul.f32 %v402, %v404
    %v406 = vsub.f32 1.0, %v405
    %v407 = vmul.f32 %v404, %v406
    %v408 = vadd.f32 %v404, %v407
    %vm409 = vweird.f32 %v402
    %vm410 = vweird.f32 %v404
    %vm411 = vmor %vm409, %vm410
    %v412 = vsel %vm411, %v404, %v408
    %v413 = vand.u32 2147483647, %v402
    %vm414 = vcmp.eq.f32.partialorder %v413, 8.507059e+37
    %v415 = vand.u32 %v402, 2147483648
    %v416 = vor.u32 1.1754944e-38, %v415
    %v417 = vsel %vm414, %v416, %v412
    %v418 = vmul.f32 1.0, %v417
    %v419 = vrcp.pop %v403
    %v420 = vmul.f32 %v403, %v419
    %v421 = vsub.f32 1.0, %v420
    %v422 = vmul.f32 %v419, %v421
    %v423 = vadd.f32 %v419, %v422
    %vm424 = vweird.f32 %v403
    %vm425 = vweird.f32 %v419
    %vm426 = vmor %vm424, %vm425
    %v427 = vsel %vm426, %v419, %v423
    %v428 = vand.u32 2147483647, %v403
    %vm429 = vcmp.eq.f32.partialorder %v428, 8.507059e+37
    %v430 = vand.u32 %v403, 2147483648
    %v431 = vor.u32 1.1754944e-38, %v430
    %v432 = vsel %vm429, %v431, %v427
    %v433 = vmul.f32 1.0, %v432
    %v434 = vtanh.pop %v395
    %v436 = vrot.slane %v326, 6
    %v438 = vmul.f32 %v418, %v436
    %v439 = vmul.f32 %v418, %v434
    %441 = vrot.lane.b32.xlu0 %v439, 64
    %v442 = vpop.permute.xlu0 %441
    %v444 = vadd.f32 %v438, %v442
    %v445 = vtanh.pop %v444
    %v446 = vmul.f32 %v433, %v445
    %448 = vrot.lane.b32.xlu0 %v446, 64
    %v449 = vpop.permute.xlu0 %448
    %s451 = scalar_lea.vmem [#allocation3], 4
    %vm452 = vcmask 259076
    %453 = vst.msk [vmem:[%s451 - $0x4] sm:$0x30] %vm452, %v449
    %454 = vrot.lane.b32.xlu0 %v446, 32
    %v455 = vpop.permute.xlu0 %454
    %s457 = scalar_lea.vmem [#allocation4], 10
    %458 = vst.msk [vmem:[%s457 - $0x4] sm:$0x30] %vm452, %v455
    %v459 = vld [vmem:[#allocation2] sm:$0xc0]
    %v460 = vld [vmem:[#allocation2 + $0x8] sm:$0xc0]
    %v461 = vrot.slane %v446, 4
    %462 = vrot.lane.b32.xlu0 %v461, 64
    %v463 = vpop.permute.xlu0 %462
    %v464 = vsel %vm121, %v463, 0
    %466 = vmatpush.msra.mxu0 0.0
    %467 = vmatpush.msra.mxu0 0.0
    %468 = vmatpush.msra.mxu0 0.0
    %469 = vmatpush.msra.mxu0 0.0
    %470 = vmatpush.msra.mxu0 0.0
    %471 = vmatpush.msra.mxu0 0.0
    %472 = vmatpush.msra.mxu0 0.0
    %473 = vmatpush.msra.mxu0 0.0
    %474 = vmatpush.msra.mxu0 %v117
    %475 = vmatpush.msra.mxu0 %v115
    %476 = vmatpush.msra.mxu0 %v113
    %477 = vmatpush.msra.mxu0 %v111
    %478 = vmatpush.msra.mxu0 %v109
    %479 = vmatpush.msra.mxu0 %v107
    %480 = vmatpush.msra.mxu0 %v105
    %481 = vmatpush.msra.mxu0 %v103
    %482 = vmatmul.f32.gmra.mxu0 %v464
    %v483 = vpop.f32.mrf.mxu0
    %v484 = vadd.f32 0.0, %v483
    %485 = vdwg.mxu0
    %486 = vmatpush.msra.mxu0 0.0
    %487 = vmatpush.msra.mxu0 0.0
    %488 = vmatpush.msra.mxu0 0.0
    %489 = vmatpush.msra.mxu0 0.0
    %490 = vmatpush.msra.mxu0 0.0
    %491 = vmatpush.msra.mxu0 0.0
    %492 = vmatpush.msra.mxu0 0.0
    %493 = vmatpush.msra.mxu0 0.0
    %494 = vmatpush.msra.mxu0 %v118
    %495 = vmatpush.msra.mxu0 %v116
    %496 = vmatpush.msra.mxu0 %v114
    %497 = vmatpush.msra.mxu0 %v112
    %498 = vmatpush.msra.mxu0 %v110
    %499 = vmatpush.msra.mxu0 %v108
    %500 = vmatpush.msra.mxu0 %v106
    %501 = vmatpush.msra.mxu0 %v104
    %502 = vmatmul.f32.gmra.mxu0 %v464
    %v503 = vpop.f32.mrf.mxu0
    %v504 = vadd.f32 0.0, %v503
    %505 = vdwg.mxu0
    %v508 = vrot.slane %v484, 2
    %v509 = vrot.slane %v504, 2
    %v512 = vadd.f32 %v459, %v508
    %v513 = vadd.f32 %v460, %v509
    %v514 = vxor.u32 %v512, 2147483648
    %v515 = vxor.u32 %v513, 2147483648
    %v516 = vmul.f32 %v514, 1.442695
    %v517 = vpow.pop %v516
    %v518 = vmul.f32 %v515, 1.442695
    %v519 = vpow.pop %v518
    %v520 = vadd.f32 %v517, 1.0
    %v521 = vadd.f32 %v519, 1.0
    %v522 = vrcp.pop %v520
    %v523 = vmul.f32 %v520, %v522
    %v524 = vsub.f32 1.0, %v523
    %v525 = vmul.f32 %v522, %v524
    %v526 = vadd.f32 %v522, %v525
    %vm527 = vweird.f32 %v520
    %vm528 = vweird.f32 %v522
    %vm529 = vmor %vm527, %vm528
    %v530 = vsel %vm529, %v522, %v526
    %v531 = vand.u32 2147483647, %v520
    %vm532 = vcmp.eq.f32.partialorder %v531, 8.507059e+37
    %v533 = vand.u32 %v520, 2147483648
    %v534 = vor.u32 1.1754944e-38, %v533
    %v535 = vsel %vm532, %v534, %v530
    %v536 = vmul.f32 1.0, %v535
    %v537 = vrcp.pop %v521
    %v538 = vmul.f32 %v521, %v537
    %v539 = vsub.f32 1.0, %v538
    %v540 = vmul.f32 %v537, %v539
    %v541 = vadd.f32 %v537, %v540
    %vm542 = vweird.f32 %v521
    %vm543 = vweird.f32 %v537
    %vm544 = vmor %vm542, %vm543
    %v545 = vsel %vm544, %v537, %v541
    %v546 = vand.u32 2147483647, %v521
    %vm547 = vcmp.eq.f32.partialorder %v546, 8.507059e+37
    %v548 = vand.u32 %v521, 2147483648
    %v549 = vor.u32 1.1754944e-38, %v548
    %v550 = vsel %vm547, %v549, %v545
    %v551 = vmul.f32 1.0, %v550
    %v552 = vtanh.pop %v513
    %v554 = vrot.slane %v444, 6
    %v556 = vmul.f32 %v536, %v554
    %v557 = vmul.f32 %v536, %v552
    %559 = vrot.lane.b32.xlu0 %v557, 64
    %v560 = vpop.permute.xlu0 %559
    %v562 = vadd.f32 %v556, %v560
    %v563 = vtanh.pop %v562
    %v564 = vmul.f32 %v551, %v563
    %566 = vrot.lane.b32.xlu0 %v564, 64
    %v567 = vpop.permute.xlu0 %566
    %s569 = scalar_lea.vmem [#allocation3], 6
    %vm570 = vcmask 261126
    %571 = vst.msk [vmem:[%s569 - $0x6] sm:$0xc0] %vm570, %v567
    %572 = vrot.lane.b32.xlu0 %v564, 32
    %v573 = vpop.permute.xlu0 %572
    %s575 = scalar_lea.vmem [#allocation4], 8
    %576 = vst.msk [vmem:[%s575 - $0x6] sm:$0xc0] %vm570, %v573
    %v577 = vld [vmem:[#allocation2 + $0x10] sm:$0x3]
    %v578 = vld [vmem:[#allocation2 + $0x18] sm:$0x3]
    %v579 = vrot.slane %v564, 6
    %580 = vrot.lane.b32.xlu0 %v579, 64
    %v581 = vpop.permute.xlu0 %580
    %v582 = vsel %vm121, %v581, 0
    %584 = vmatpush.msra.mxu0 0.0
    %585 = vmatpush.msra.mxu0 0.0
    %586 = vmatpush.msra.mxu0 0.0
    %587 = vmatpush.msra.mxu0 0.0
    %588 = vmatpush.msra.mxu0 0.0
    %589 = vmatpush.msra.mxu0 0.0
    %590 = vmatpush.msra.mxu0 0.0
    %591 = vmatpush.msra.mxu0 0.0
    %592 = vmatpush.msra.mxu0 %v117
    %593 = vmatpush.msra.mxu0 %v115
    %594 = vmatpush.msra.mxu0 %v113
    %595 = vmatpush.msra.mxu0 %v111
    %596 = vmatpush.msra.mxu0 %v109
    %597 = vmatpush.msra.mxu0 %v107
    %598 = vmatpush.msra.mxu0 %v105
    %599 = vmatpush.msra.mxu0 %v103
    %600 = vmatmul.f32.gmra.mxu0 %v582
    %v601 = vpop.f32.mrf.mxu0
    %v602 = vadd.f32 0.0, %v601
    %603 = vdwg.mxu0
    %604 = vmatpush.msra.mxu0 0.0
    %605 = vmatpush.msra.mxu0 0.0
    %606 = vmatpush.msra.mxu0 0.0
    %607 = vmatpush.msra.mxu0 0.0
    %608 = vmatpush.msra.mxu0 0.0
    %609 = vmatpush.msra.mxu0 0.0
    %610 = vmatpush.msra.mxu0 0.0
    %611 = vmatpush.msra.mxu0 0.0
    %612 = vmatpush.msra.mxu0 %v118
    %613 = vmatpush.msra.mxu0 %v116
    %614 = vmatpush.msra.mxu0 %v114
    %615 = vmatpush.msra.mxu0 %v112
    %616 = vmatpush.msra.mxu0 %v110
    %617 = vmatpush.msra.mxu0 %v108
    %618 = vmatpush.msra.mxu0 %v106
    %619 = vmatpush.msra.mxu0 %v104
    %620 = vmatmul.f32.gmra.mxu0 %v582
    %v621 = vpop.f32.mrf.mxu0
    %v622 = vadd.f32 0.0, %v621
    %623 = vdwg.mxu0
    %v624 = vadd.f32 %v577, %v602
    %v625 = vadd.f32 %v578, %v622
    %v626 = vxor.u32 %v624, 2147483648
    %v627 = vxor.u32 %v625, 2147483648
    %v628 = vmul.f32 %v626, 1.442695
    %v629 = vpow.pop %v628
    %v630 = vmul.f32 %v627, 1.442695
    %v631 = vpow.pop %v630
    %v632 = vadd.f32 %v629, 1.0
    %v633 = vadd.f32 %v631, 1.0
    %v634 = vrcp.pop %v632
    %v635 = vmul.f32 %v632, %v634
    %v636 = vsub.f32 1.0, %v635
    %v637 = vmul.f32 %v634, %v636
    %v638 = vadd.f32 %v634, %v637
    %vm639 = vweird.f32 %v632
    %vm640 = vweird.f32 %v634
    %vm641 = vmor %vm639, %vm640
    %v642 = vsel %vm641, %v634, %v638
    %v643 = vand.u32 2147483647, %v632
    %vm644 = vcmp.eq.f32.partialorder %v643, 8.507059e+37
    %v645 = vand.u32 %v632, 2147483648
    %v646 = vor.u32 1.1754944e-38, %v645
    %v647 = vsel %vm644, %v646, %v642
    %v648 = vmul.f32 1.0, %v647
    %v649 = vrcp.pop %v633
    %v650 = vmul.f32 %v633, %v649
    %v651 = vsub.f32 1.0, %v650
    %v652 = vmul.f32 %v649, %v651
    %v653 = vadd.f32 %v649, %v652
    %vm654 = vweird.f32 %v633
    %vm655 = vweird.f32 %v649
    %vm656 = vmor %vm654, %vm655
    %v657 = vsel %vm656, %v649, %v653
    %v658 = vand.u32 2147483647, %v633
    %vm659 = vcmp.eq.f32.partialorder %v658, 8.507059e+37
    %v660 = vand.u32 %v633, 2147483648
    %v661 = vor.u32 1.1754944e-38, %v660
    %v662 = vsel %vm659, %v661, %v657
    %v663 = vmul.f32 1.0, %v662
    %v664 = vtanh.pop %v625
    %v666 = vrot.slane %v562, 6
    %v668 = vmul.f32 %v648, %v666
    %v669 = vmul.f32 %v648, %v664
    %671 = vrot.lane.b32.xlu0 %v669, 64
    %v672 = vpop.permute.xlu0 %671
    %v674 = vadd.f32 %v668, %v672
    %v675 = vtanh.pop %v674
    %v676 = vmul.f32 %v663, %v675
    %678 = vrot.lane.b32.xlu0 %v676, 64
    %v679 = vpop.permute.xlu0 %678
    %s681 = scalar_lea.vmem [#allocation3], 8
    %682 = vst.msk [vmem:[%s681] sm:$0x3] %vm219, %v679
    %683 = vrot.lane.b32.xlu0 %v676, 32
    %v684 = vpop.permute.xlu0 %683
    %s686 = scalar_lea.vmem [#allocation4], 6
    %687 = vst.msk [vmem:[%s686] sm:$0x3] %vm219, %v684
    %v688 = vld [vmem:[#allocation2 + $0x10] sm:$0xc]
    %v689 = vld [vmem:[#allocation2 + $0x18] sm:$0xc]
    %v690 = vsel %vm121, %v679, 0
    %692 = vmatpush.msra.mxu0 0.0
    %693 = vmatpush.msra.mxu0 0.0
    %694 = vmatpush.msra.mxu0 0.0
    %695 = vmatpush.msra.mxu0 0.0
    %696 = vmatpush.msra.mxu0 0.0
    %697 = vmatpush.msra.mxu0 0.0
    %698 = vmatpush.msra.mxu0 0.0
    %699 = vmatpush.msra.mxu0 0.0
    %700 = vmatpush.msra.mxu0 %v117
    %701 = vmatpush.msra.mxu0 %v115
    %702 = vmatpush.msra.mxu0 %v113
    %703 = vmatpush.msra.mxu0 %v111
    %704 = vmatpush.msra.mxu0 %v109
    %705 = vmatpush.msra.mxu0 %v107
    %706 = vmatpush.msra.mxu0 %v105
    %707 = vmatpush.msra.mxu0 %v103
    %708 = vmatmul.f32.gmra.mxu0 %v690
    %v709 = vpop.f32.mrf.mxu0
    %v710 = vadd.f32 0.0, %v709
    %711 = vdwg.mxu0
    %712 = vmatpush.msra.mxu0 0.0
    %713 = vmatpush.msra.mxu0 0.0
    %714 = vmatpush.msra.mxu0 0.0
    %715 = vmatpush.msra.mxu0 0.0
    %716 = vmatpush.msra.mxu0 0.0
    %717 = vmatpush.msra.mxu0 0.0
    %718 = vmatpush.msra.mxu0 0.0
    %719 = vmatpush.msra.mxu0 0.0
    %720 = vmatpush.msra.mxu0 %v118
    %721 = vmatpush.msra.mxu0 %v116
    %722 = vmatpush.msra.mxu0 %v114
    %723 = vmatpush.msra.mxu0 %v112
    %724 = vmatpush.msra.mxu0 %v110
    %725 = vmatpush.msra.mxu0 %v108
    %726 = vmatpush.msra.mxu0 %v106
    %727 = vmatpush.msra.mxu0 %v104
    %728 = vmatmul.f32.gmra.mxu0 %v690
    %v729 = vpop.f32.mrf.mxu0
    %v730 = vadd.f32 0.0, %v729
    %731 = vdwg.mxu0
    %v734 = vrot.slane %v710, 6
    %v735 = vrot.slane %v730, 6
    %v738 = vadd.f32 %v688, %v734
    %v739 = vadd.f32 %v689, %v735
    %v740 = vxor.u32 %v738, 2147483648
    %v741 = vxor.u32 %v739, 2147483648
    %v742 = vmul.f32 %v740, 1.442695
    %v743 = vpow.pop %v742
    %v744 = vmul.f32 %v741, 1.442695
    %v745 = vpow.pop %v744
    %v746 = vadd.f32 %v743, 1.0
    %v747 = vadd.f32 %v745, 1.0
    %v748 = vrcp.pop %v746
    %v749 = vmul.f32 %v746, %v748
    %v750 = vsub.f32 1.0, %v749
    %v751 = vmul.f32 %v748, %v750
    %v752 = vadd.f32 %v748, %v751
    %vm753 = vweird.f32 %v746
    %vm754 = vweird.f32 %v748
    %vm755 = vmor %vm753, %vm754
    %v756 = vsel %vm755, %v748, %v752
    %v757 = vand.u32 2147483647, %v746
    %vm758 = vcmp.eq.f32.partialorder %v757, 8.507059e+37
    %v759 = vand.u32 %v746, 2147483648
    %v760 = vor.u32 1.1754944e-38, %v759
    %v761 = vsel %vm758, %v760, %v756
    %v762 = vmul.f32 1.0, %v761
    %v763 = vrcp.pop %v747
    %v764 = vmul.f32 %v747, %v763
    %v765 = vsub.f32 1.0, %v764
    %v766 = vmul.f32 %v763, %v765
    %v767 = vadd.f32 %v763, %v766
    %vm768 = vweird.f32 %v747
    %vm769 = vweird.f32 %v763
    %vm770 = vmor %vm768, %vm769
    %v771 = vsel %vm770, %v763, %v767
    %v772 = vand.u32 2147483647, %v747
    %vm773 = vcmp.eq.f32.partialorder %v772, 8.507059e+37
    %v774 = vand.u32 %v747, 2147483648
    %v775 = vor.u32 1.1754944e-38, %v774
    %v776 = vsel %vm773, %v775, %v771
    %v777 = vmul.f32 1.0, %v776
    %v778 = vtanh.pop %v739
    %v780 = vrot.slane %v674, 6
    %v782 = vmul.f32 %v762, %v780
    %v783 = vmul.f32 %v762, %v778
    %785 = vrot.lane.b32.xlu0 %v783, 64
    %v786 = vpop.permute.xlu0 %785
    %v788 = vadd.f32 %v782, %v786
    %v789 = vtanh.pop %v788
    %v790 = vmul.f32 %v777, %v789
    %792 = vrot.lane.b32.xlu0 %v790, 64
    %v793 = vpop.permute.xlu0 %792
    %s795 = scalar_lea.vmem [#allocation3], 10
    %796 = vst.msk [vmem:[%s795 - $0x2] sm:$0xc] %vm334, %v793
    %797 = vrot.lane.b32.xlu0 %v790, 32
    %v798 = vpop.permute.xlu0 %797
    %s800 = scalar_lea.vmem [#allocation4], 4
    %801 = vst.msk [vmem:[%s800 - $0x2] sm:$0xc] %vm334, %v798
    %v802 = vld [vmem:[#allocation2 + $0x10] sm:$0x30]
    %v803 = vld [vmem:[#allocation2 + $0x18] sm:$0x30]
    %v804 = vrot.slane %v790, 2
    %805 = vrot.lane.b32.xlu0 %v804, 64
    %v806 = vpop.permute.xlu0 %805
    %v807 = vsel %vm121, %v806, 0
    %809 = vmatpush.msra.mxu0 0.0
    %810 = vmatpush.msra.mxu0 0.0
    %811 = vmatpush.msra.mxu0 0.0
    %812 = vmatpush.msra.mxu0 0.0
    %813 = vmatpush.msra.mxu0 0.0
    %814 = vmatpush.msra.mxu0 0.0
    %815 = vmatpush.msra.mxu0 0.0
    %816 = vmatpush.msra.mxu0 0.0
    %817 = vmatpush.msra.mxu0 %v117
    %818 = vmatpush.msra.mxu0 %v115
    %819 = vmatpush.msra.mxu0 %v113
    %820 = vmatpush.msra.mxu0 %v111
    %821 = vmatpush.msra.mxu0 %v109
    %822 = vmatpush.msra.mxu0 %v107
    %823 = vmatpush.msra.mxu0 %v105
    %824 = vmatpush.msra.mxu0 %v103
    %825 = vmatmul.f32.gmra.mxu0 %v807
    %v826 = vpop.f32.mrf.mxu0
    %v827 = vadd.f32 0.0, %v826
    %828 = vdwg.mxu0
    %829 = vmatpush.msra.mxu0 0.0
    %830 = vmatpush.msra.mxu0 0.0
    %831 = vmatpush.msra.mxu0 0.0
    %832 = vmatpush.msra.mxu0 0.0
    %833 = vmatpush.msra.mxu0 0.0
    %834 = vmatpush.msra.mxu0 0.0
    %835 = vmatpush.msra.mxu0 0.0
    %836 = vmatpush.msra.mxu0 0.0
    %837 = vmatpush.msra.mxu0 %v118
    %838 = vmatpush.msra.mxu0 %v116
    %839 = vmatpush.msra.mxu0 %v114
    %840 = vmatpush.msra.mxu0 %v112
    %841 = vmatpush.msra.mxu0 %v110
    %842 = vmatpush.msra.mxu0 %v108
    %843 = vmatpush.msra.mxu0 %v106
    %844 = vmatpush.msra.mxu0 %v104
    %845 = vmatmul.f32.gmra.mxu0 %v807
    %v846 = vpop.f32.mrf.mxu0
    %v847 = vadd.f32 0.0, %v846
    %848 = vdwg.mxu0
    %v851 = vrot.slane %v827, 4
    %v852 = vrot.slane %v847, 4
    %v855 = vadd.f32 %v802, %v851
    %v856 = vadd.f32 %v803, %v852
    %v857 = vxor.u32 %v855, 2147483648
    %v858 = vxor.u32 %v856, 2147483648
    %v859 = vmul.f32 %v857, 1.442695
    %v860 = vpow.pop %v859
    %v861 = vmul.f32 %v858, 1.442695
    %v862 = vpow.pop %v861
    %v863 = vadd.f32 %v860, 1.0
    %v864 = vadd.f32 %v862, 1.0
    %v865 = vrcp.pop %v863
    %v866 = vmul.f32 %v863, %v865
    %v867 = vsub.f32 1.0, %v866
    %v868 = vmul.f32 %v865, %v867
    %v869 = vadd.f32 %v865, %v868
    %vm870 = vweird.f32 %v863
    %vm871 = vweird.f32 %v865
    %vm872 = vmor %vm870, %vm871
    %v873 = vsel %vm872, %v865, %v869
    %v874 = vand.u32 2147483647, %v863
    %vm875 = vcmp.eq.f32.partialorder %v874, 8.507059e+37
    %v876 = vand.u32 %v863, 2147483648
    %v877 = vor.u32 1.1754944e-38, %v876
    %v878 = vsel %vm875, %v877, %v873
    %v879 = vmul.f32 1.0, %v878
    %v880 = vrcp.pop %v864
    %v881 = vmul.f32 %v864, %v880
    %v882 = vsub.f32 1.0, %v881
    %v883 = vmul.f32 %v880, %v882
    %v884 = vadd.f32 %v880, %v883
    %vm885 = vweird.f32 %v864
    %vm886 = vweird.f32 %v880
    %vm887 = vmor %vm885, %vm886
    %v888 = vsel %vm887, %v880, %v884
    %v889 = vand.u32 2147483647, %v864
    %vm890 = vcmp.eq.f32.partialorder %v889, 8.507059e+37
    %v891 = vand.u32 %v864, 2147483648
    %v892 = vor.u32 1.1754944e-38, %v891
    %v893 = vsel %vm890, %v892, %v888
    %v894 = vmul.f32 1.0, %v893
    %v895 = vtanh.pop %v856
    %v897 = vrot.slane %v788, 6
    %v899 = vmul.f32 %v879, %v897
    %v900 = vmul.f32 %v879, %v895
    %902 = vrot.lane.b32.xlu0 %v900, 64
    %v903 = vpop.permute.xlu0 %902
    %v905 = vadd.f32 %v899, %v903
    %v906 = vtanh.pop %v905
    %v907 = vmul.f32 %v894, %v906
    %909 = vrot.lane.b32.xlu0 %v907, 64
    %v910 = vpop.permute.xlu0 %909
    %s912 = scalar_lea.vmem [#allocation3], 12
    %913 = vst.msk [vmem:[%s912 - $0x4] sm:$0x30] %vm452, %v910
    %914 = vrot.lane.b32.xlu0 %v907, 32
    %v915 = vpop.permute.xlu0 %914
    %s917 = scalar_lea.vmem [#allocation4], 2
    %918 = vst.msk [vmem:[%s917 - $0x4] sm:$0x30] %vm452, %v915
    %v919 = vld [vmem:[#allocation2 + $0x10] sm:$0xc0]
    %v920 = vld [vmem:[#allocation2 + $0x18] sm:$0xc0]
    %v921 = vrot.slane %v907, 4
    %922 = vrot.lane.b32.xlu0 %v921, 64
    %v923 = vpop.permute.xlu0 %922
    %v924 = vsel %vm121, %v923, 0
    %926 = vmatpush.msra.mxu0 0.0
    %927 = vmatpush.msra.mxu0 0.0
    %928 = vmatpush.msra.mxu0 0.0
    %929 = vmatpush.msra.mxu0 0.0
    %930 = vmatpush.msra.mxu0 0.0
    %931 = vmatpush.msra.mxu0 0.0
    %932 = vmatpush.msra.mxu0 0.0
    %933 = vmatpush.msra.mxu0 0.0
    %934 = vmatpush.msra.mxu0 %v117
    %935 = vmatpush.msra.mxu0 %v115
    %936 = vmatpush.msra.mxu0 %v113
    %937 = vmatpush.msra.mxu0 %v111
    %938 = vmatpush.msra.mxu0 %v109
    %939 = vmatpush.msra.mxu0 %v107
    %940 = vmatpush.msra.mxu0 %v105
    %941 = vmatpush.msra.mxu0 %v103
    %942 = vmatmul.f32.gmra.mxu0 %v924
    %v943 = vpop.f32.mrf.mxu0
    %v944 = vadd.f32 0.0, %v943
    %945 = vdwg.mxu0
    %946 = vmatpush.msra.mxu0 0.0
    %947 = vmatpush.msra.mxu0 0.0
    %948 = vmatpush.msra.mxu0 0.0
    %949 = vmatpush.msra.mxu0 0.0
    %950 = vmatpush.msra.mxu0 0.0
    %951 = vmatpush.msra.mxu0 0.0
    %952 = vmatpush.msra.mxu0 0.0
    %953 = vmatpush.msra.mxu0 0.0
    %954 = vmatpush.msra.mxu0 %v118
    %955 = vmatpush.msra.mxu0 %v116
    %956 = vmatpush.msra.mxu0 %v114
    %957 = vmatpush.msra.mxu0 %v112
    %958 = vmatpush.msra.mxu0 %v110
    %959 = vmatpush.msra.mxu0 %v108
    %960 = vmatpush.msra.mxu0 %v106
    %961 = vmatpush.msra.mxu0 %v104
    %962 = vmatmul.f32.gmra.mxu0 %v924
    %v963 = vpop.f32.mrf.mxu0
    %v964 = vadd.f32 0.0, %v963
    %965 = vdwg.mxu0
    %v968 = vrot.slane %v944, 2
    %v969 = vrot.slane %v964, 2
    %v972 = vadd.f32 %v919, %v968
    %v973 = vadd.f32 %v920, %v969
    %v974 = vxor.u32 %v972, 2147483648
    %v975 = vxor.u32 %v973, 2147483648
    %v976 = vmul.f32 %v974, 1.442695
    %v977 = vpow.pop %v976
    %v978 = vmul.f32 %v975, 1.442695
    %v979 = vpow.pop %v978
    %v980 = vadd.f32 %v977, 1.0
    %v981 = vadd.f32 %v979, 1.0
    %v982 = vrcp.pop %v980
    %v983 = vmul.f32 %v980, %v982
    %v984 = vsub.f32 1.0, %v983
    %v985 = vmul.f32 %v982, %v984
    %v986 = vadd.f32 %v982, %v985
    %vm987 = vweird.f32 %v980
    %vm988 = vweird.f32 %v982
    %vm989 = vmor %vm987, %vm988
    %v990 = vsel %vm989, %v982, %v986
    %v991 = vand.u32 2147483647, %v980
    %vm992 = vcmp.eq.f32.partialorder %v991, 8.507059e+37
    %v993 = vand.u32 %v980, 2147483648
    %v994 = vor.u32 1.1754944e-38, %v993
    %v995 = vsel %vm992, %v994, %v990
    %v996 = vmul.f32 1.0, %v995
    %v997 = vrcp.pop %v981
    %v998 = vmul.f32 %v981, %v997
    %v999 = vsub.f32 1.0, %v998
    %v1000 = vmul.f32 %v997, %v999
    %v1001 = vadd.f32 %v997, %v1000
    %vm1002 = vweird.f32 %v981
    %vm1003 = vweird.f32 %v997
    %vm1004 = vmor %vm1002, %vm1003
    %v1005 = vsel %vm1004, %v997, %v1001
    %v1006 = vand.u32 2147483647, %v981
    %vm1007 = vcmp.eq.f32.partialorder %v1006, 8.507059e+37
    %v1008 = vand.u32 %v981, 2147483648
    %v1009 = vor.u32 1.1754944e-38, %v1008
    %v1010 = vsel %vm1007, %v1009, %v1005
    %v1011 = vmul.f32 1.0, %v1010
    %v1012 = vtanh.pop %v973
    %v1014 = vrot.slane %v905, 6
    %v1016 = vmul.f32 %v996, %v1014
    %v1017 = vmul.f32 %v996, %v1012
    %1019 = vrot.lane.b32.xlu0 %v1017, 64
    %v1020 = vpop.permute.xlu0 %1019
    %v1022 = vadd.f32 %v1016, %v1020
    %v1023 = vtanh.pop %v1022
    %v1024 = vmul.f32 %v1011, %v1023
    %1026 = vrot.lane.b32.xlu0 %v1024, 64
    %v1027 = vpop.permute.xlu0 %1026
    %s1029 = scalar_lea.vmem [#allocation3], 14
    %1030 = vst.msk [vmem:[%s1029 - $0x6] sm:$0xc0] %vm570, %v1027
    %1031 = vrot.lane.b32.xlu0 %v1024, 32
    %v1032 = vpop.permute.xlu0 %1031
    %1034 = vst.msk [vmem:[#allocation4 - $0x6] sm:$0xc0] %vm570, %v1032
    %v1035 = vld [vmem:[#allocation3] sm:$0x3]
    %v1036 = vld [vmem:[#allocation3 + $0x2] sm:$0x3]
    %v1037 = vld [vmem:[#allocation3 + $0x4] sm:$0x3]
    %v1038 = vld [vmem:[#allocation3 + $0x6] sm:$0x3]
    %v1039 = vld [vmem:[#allocation3 + $0x8] sm:$0x3]
    %v1040 = vld [vmem:[#allocation3 + $0xa] sm:$0x3]
    %v1041 = vld [vmem:[#allocation3 + $0xc] sm:$0x3]
    %v1042 = vld [vmem:[#allocation3 + $0xe] sm:$0x3]
    %v1043 = vld [vmem:[#allocation4] sm:$0x3]
    %v1044 = vld [vmem:[#allocation4 + $0x2] sm:$0x3]
    %v1045 = vld [vmem:[#allocation4 + $0x4] sm:$0x3]
    %v1046 = vld [vmem:[#allocation4 + $0x6] sm:$0x3]
    %v1047 = vld [vmem:[#allocation4 + $0x8] sm:$0x3]
    %v1048 = vld [vmem:[#allocation4 + $0xa] sm:$0x3]
    %v1049 = vld [vmem:[#allocation4 + $0xc] sm:$0x3]
    %v1050 = vld [vmem:[#allocation4 + $0xe] sm:$0x3]
    %v1051 = vld [vmem:[%s4] sm:$0xff]
    %v1052 = vld [vmem:[%s4 + $0x8] sm:$0xff]
    %v1053 = vld [vmem:[%s4 + $0x10] sm:$0xff]
    %v1054 = vld [vmem:[%s4 + $0x18] sm:$0xff]
    %v1055 = vld [vmem:[%s4 + $0x20] sm:$0xff]
    %v1056 = vld [vmem:[%s4 + $0x28] sm:$0xff]
    %v1057 = vld [vmem:[%s4 + $0x30] sm:$0xff]
    %v1058 = vld [vmem:[%s4 + $0x38] sm:$0xff]
    %v1059 = vld [vmem:[%s5] sm:$0x1]
    %v1068 = vrot.slane %v1036, 7
    %vm1069 = vcmask 1041409
    %v1070 = vsel %vm1069, %v1068, %v1035
    %v1071 = vrot.slane %v1037, 6
    %vm1072 = vcmask 1042434
    %v1073 = vsel %vm1072, %v1071, %v1070
    %v1074 = vrot.slane %v1038, 5
    %vm1075 = vcmask 1043459
    %v1076 = vsel %vm1075, %v1074, %v1073
    %v1077 = vrot.slane %v1039, 4
    %vm1078 = vcmask 1044484
    %v1079 = vsel %vm1078, %v1077, %v1076
    %v1080 = vrot.slane %v1040, 3
    %vm1081 = vcmask 1045509
    %v1082 = vsel %vm1081, %v1080, %v1079
    %v1083 = vrot.slane %v1041, 2
    %vm1084 = vcmask 1046534
    %v1085 = vsel %vm1084, %v1083, %v1082
    %v1086 = vrot.slane %v1042, 1
    %vm1087 = vcmask 1047559
    %v1088 = vsel %vm1087, %v1086, %v1085
    %v1098 = vrot.slane %v1044, 7
    %v1099 = vsel %vm1069, %v1098, %v1043
    %v1100 = vrot.slane %v1045, 6
    %v1101 = vsel %vm1072, %v1100, %v1099
    %v1102 = vrot.slane %v1046, 5
    %v1103 = vsel %vm1075, %v1102, %v1101
    %v1104 = vrot.slane %v1047, 4
    %v1105 = vsel %vm1078, %v1104, %v1103
    %v1106 = vrot.slane %v1048, 3
    %v1107 = vsel %vm1081, %v1106, %v1105
    %v1108 = vrot.slane %v1049, 2
    %v1109 = vsel %vm1084, %v1108, %v1107
    %v1110 = vrot.slane %v1050, 1
    %v1111 = vsel %vm1087, %v1110, %v1109
    %1112 = vrot.lane.b32.xlu0 %v1111, 32
    %v1113 = vpop.permute.xlu0 %1112
    %v1115 = vsel %vm46, %v1088, %v1113
    %v1117 = vperm.slane %v1059, 0
    %v1120 = vsel %vm121, %v1115, 0
    %1122 = vmatpush.msra.mxu0 0.0
    %1123 = vmatpush.msra.mxu0 0.0
    %1124 = vmatpush.msra.mxu0 0.0
    %1125 = vmatpush.msra.mxu0 0.0
    %1126 = vmatpush.msra.mxu0 0.0
    %1127 = vmatpush.msra.mxu0 0.0
    %1128 = vmatpush.msra.mxu0 0.0
    %1129 = vmatpush.msra.mxu0 0.0
    %1130 = vmatpush.msra.mxu0 %v1058
    %1131 = vmatpush.msra.mxu0 %v1057
    %1132 = vmatpush.msra.mxu0 %v1056
    %1133 = vmatpush.msra.mxu0 %v1055
    %1134 = vmatpush.msra.mxu0 %v1054
    %1135 = vmatpush.msra.mxu0 %v1053
    %1136 = vmatpush.msra.mxu0 %v1052
    %1137 = vmatpush.msra.mxu0 %v1051
    %1138 = vmatmul.f32.gmra.mxu0 %v1120
    %v1139 = vpop.f32.mrf.mxu0
    %v1140 = vadd.f32 %v1117, %v1139
    %1141 = vdwg.mxu0
    %v1142 = vtanh.pop %v1140
    %vm1143 = vcmask 64512
    %v1144 = vsel %vm1143, %v1142, -inf
    %v1145 = vrot.slane %v1144, 4
    %v1146 = vmax.f32 %v1144, %v1145
    %v1147 = vrot.slane %v1146, 2
    %v1148 = vmax.f32 %v1146, %v1147
    %v1149 = vrot.slane %v1148, 1
    %v1150 = vmax.f32 %v1148, %v1149
    %v1151 = vsub.f32 %v1142, %v1150
    %v1152 = vmul.f32 %v1151, 1.442695
    %v1153 = vpow.pop %v1152
    %v1154 = vsel %vm1143, %v1153, 0.0
    %v1155 = vrot.slane %v1154, 4
    %v1156 = vadd.f32 %v1154, %v1155
    %v1157 = vrot.slane %v1156, 2
    %v1158 = vadd.f32 %v1156, %v1157
    %v1159 = vrot.slane %v1158, 1
    %v1160 = vadd.f32 %v1158, %v1159
    %v1161 = vrcp.pop %v1160
    %v1162 = vmul.f32 %v1153, %v1161
    %v1164 = vsel %vm1143, %v1162, 0
    %1166 = vmatpush.msra.mxu0 0.0
    %1167 = vmatpush.msra.mxu0 0.0
    %1168 = vmatpush.msra.mxu0 0.0
    %1169 = vmatpush.msra.mxu0 0.0
    %1170 = vmatpush.msra.mxu0 0.0
    %1171 = vmatpush.msra.mxu0 0.0
    %1172 = vmatpush.msra.mxu0 0.0
    %1173 = vmatpush.msra.mxu0 0.0
    %1174 = vmatpush.msra.mxu0 0.0
    %1175 = vmatpush.msra.mxu0 0.0
    %1176 = vmatpush.msra.mxu0 0.0
    %1177 = vmatpush.msra.mxu0 0.0
    %1178 = vmatpush.msra.mxu0 0.0
    %1179 = vmatpush.msra.mxu0 0.0
    %1180 = vmatpush.msra.mxu0 0.0
    %1181 = vmatpush.msra.mxu0 %v1115
    %1182 = vmatmul.f32.gmra.mxu0 %v1164
    %v1183 = vpop.f32.mrf.mxu0
    %v1184 = vadd.f32 0.0, %v1183
    %1185 = vdwg.mxu0
    %v1187 = vrot.slane %v1184, 1
    %v1188 = vrot.slane %v1184, 2
    %v1189 = vrot.slane %v1184, 3
    %v1190 = vrot.slane %v1184, 4
    %v1191 = vrot.slane %v1184, 5
    %v1192 = vrot.slane %v1184, 6
    %v1193 = vrot.slane %v1184, 7
    %vm1201 = vcmask 516096
    %1202 = vst.msk [vmem:[#allocation5] sm:$0x1] %vm1201, %v1184
    %1203 = vst.msk [vmem:[#allocation5 + $0x2] sm:$0x1] %vm1201, %v1187
    %1204 = vst.msk [vmem:[#allocation5 + $0x4] sm:$0x1] %vm1201, %v1188
    %1205 = vst.msk [vmem:[#allocation5 + $0x6] sm:$0x1] %vm1201, %v1189
    %1206 = vst.msk [vmem:[#allocation5 + $0x8] sm:$0x1] %vm1201, %v1190
    %1207 = vst.msk [vmem:[#allocation5 + $0xa] sm:$0x1] %vm1201, %v1191
    %1208 = vst.msk [vmem:[#allocation5 + $0xc] sm:$0x1] %vm1201, %v1192
    %1209 = vst.msk [vmem:[#allocation5 + $0xe] sm:$0x1] %vm1201, %v1193
    %v1210 = vsel %vm1072, %v1068, %v1035
    %v1211 = vsel %vm1075, %v1071, %v1210
    %v1212 = vsel %vm1078, %v1074, %v1211
    %v1213 = vsel %vm1081, %v1077, %v1212
    %v1214 = vsel %vm1084, %v1080, %v1213
    %v1215 = vsel %vm1087, %v1083, %v1214
    %v1218 = vsel %vm1072, %v1098, %v1043
    %v1219 = vsel %vm1075, %v1100, %v1218
    %v1220 = vsel %vm1078, %v1102, %v1219
    %v1221 = vsel %vm1081, %v1104, %v1220
    %v1222 = vsel %vm1084, %v1106, %v1221
    %v1223 = vsel %vm1087, %v1108, %v1222
    %1224 = vrot.lane.b32.xlu0 %v1223, 32
    %v1225 = vpop.permute.xlu0 %1224
    %1226 = vrot.lane.b32.xlu0 %v1110, 32
    %v1227 = vpop.permute.xlu0 %1226
    %v1230 = vsel %vm46, %v1215, %v1225
    %v1231 = vsel %vm46, %v1086, %v1227
    %vm1234 = vcmask 1046528
    %v1235 = vrot.slane %v1230, 1
    %v1236 = vrot.slane %v1231, 1
    %v1237 = vsel %vm1234, %v1235, %v1236
    %v1238 = vsel %vm121, %v1237, 0
    %1240 = vmatpush.msra.mxu0 0.0
    %1241 = vmatpush.msra.mxu0 0.0
    %1242 = vmatpush.msra.mxu0 0.0
    %1243 = vmatpush.msra.mxu0 0.0
    %1244 = vmatpush.msra.mxu0 0.0
    %1245 = vmatpush.msra.mxu0 0.0
    %1246 = vmatpush.msra.mxu0 0.0
    %1247 = vmatpush.msra.mxu0 0.0
    %1248 = vmatpush.msra.mxu0 %v1058
    %1249 = vmatpush.msra.mxu0 %v1057
    %1250 = vmatpush.msra.mxu0 %v1056
    %1251 = vmatpush.msra.mxu0 %v1055
    %1252 = vmatpush.msra.mxu0 %v1054
    %1253 = vmatpush.msra.mxu0 %v1053
    %1254 = vmatpush.msra.mxu0 %v1052
    %1255 = vmatpush.msra.mxu0 %v1051
    %1256 = vmatmul.f32.gmra.mxu0 %v1238
    %v1257 = vpop.f32.mrf.mxu0
    %v1258 = vadd.f32 %v1117, %v1257
    %1259 = vdwg.mxu0
    %v1260 = vtanh.pop %v1258
    %v1261 = vsel %vm1143, %v1260, -inf
    %v1262 = vrot.slane %v1261, 4
    %v1263 = vmax.f32 %v1261, %v1262
    %v1264 = vrot.slane %v1263, 2
    %v1265 = vmax.f32 %v1263, %v1264
    %v1266 = vrot.slane %v1265, 1
    %v1267 = vmax.f32 %v1265, %v1266
    %v1268 = vsub.f32 %v1260, %v1267
    %v1269 = vmul.f32 %v1268, 1.442695
    %v1270 = vpow.pop %v1269
    %v1271 = vsel %vm1143, %v1270, 0.0
    %v1272 = vrot.slane %v1271, 4
    %v1273 = vadd.f32 %v1271, %v1272
    %v1274 = vrot.slane %v1273, 2
    %v1275 = vadd.f32 %v1273, %v1274
    %v1276 = vrot.slane %v1275, 1
    %v1277 = vadd.f32 %v1275, %v1276
    %v1278 = vrcp.pop %v1277
    %v1279 = vmul.f32 %v1270, %v1278
    %v1282 = vsel %vm1143, %v1279, 0
    %1284 = vmatpush.msra.mxu0 0.0
    %1285 = vmatpush.msra.mxu0 0.0
    %1286 = vmatpush.msra.mxu0 0.0
    %1287 = vmatpush.msra.mxu0 0.0
    %1288 = vmatpush.msra.mxu0 0.0
    %1289 = vmatpush.msra.mxu0 0.0
    %1290 = vmatpush.msra.mxu0 0.0
    %1291 = vmatpush.msra.mxu0 0.0
    %1292 = vmatpush.msra.mxu0 0.0
    %1293 = vmatpush.msra.mxu0 0.0
    %1294 = vmatpush.msra.mxu0 0.0
    %1295 = vmatpush.msra.mxu0 0.0
    %1296 = vmatpush.msra.mxu0 0.0
    %1297 = vmatpush.msra.mxu0 0.0
    %1298 = vmatpush.msra.mxu0 0.0
    %1299 = vmatpush.msra.mxu0 %v1237
    %1300 = vmatmul.f32.gmra.mxu0 %v1282
    %v1301 = vpop.f32.mrf.mxu0
    %v1302 = vadd.f32 0.0, %v1301
    %1303 = vdwg.mxu0
    %v1305 = vrot.slane %v1302, 1
    %v1306 = vrot.slane %v1302, 2
    %v1307 = vrot.slane %v1302, 3
    %v1308 = vrot.slane %v1302, 4
    %v1309 = vrot.slane %v1302, 5
    %v1310 = vrot.slane %v1302, 6
    %v1311 = vrot.slane %v1302, 7
    %1319 = vst.msk [vmem:[#allocation5 + $0x1] sm:$0x1] %vm1201, %v1302
    %1320 = vst.msk [vmem:[#allocation5 + $0x3] sm:$0x1] %vm1201, %v1305
    %1321 = vst.msk [vmem:[#allocation5 + $0x5] sm:$0x1] %vm1201, %v1306
    %1322 = vst.msk [vmem:[#allocation5 + $0x7] sm:$0x1] %vm1201, %v1307
    %1323 = vst.msk [vmem:[#allocation5 + $0x9] sm:$0x1] %vm1201, %v1308
    %1324 = vst.msk [vmem:[#allocation5 + $0xb] sm:$0x1] %vm1201, %v1309
    %1325 = vst.msk [vmem:[#allocation5 + $0xd] sm:$0x1] %vm1201, %v1310
    %1326 = vst.msk [vmem:[#allocation5 + $0xf] sm:$0x1] %vm1201, %v1311
    %v1327 = vld [vmem:[#allocation5] sm:$0x3]
    %v1328 = vld [vmem:[#allocation5 + $0x2] sm:$0x3]
    %v1329 = vld [vmem:[#allocation5 + $0x4] sm:$0x3]
    %v1330 = vld [vmem:[#allocation5 + $0x6] sm:$0x3]
    %v1331 = vld [vmem:[#allocation5 + $0x8] sm:$0x3]
    %v1332 = vld [vmem:[#allocation5 + $0xa] sm:$0x3]
    %v1333 = vld [vmem:[#allocation5 + $0xc] sm:$0x3]
    %v1334 = vld [vmem:[#allocation5 + $0xe] sm:$0x3]
    %v1335 = vld [vmem:[%s6] sm:$0xff]
    %v1336 = vld [vmem:[%s6 + $0x8] sm:$0xff]
    %v1337 = vld [vmem:[%s6 + $0x10] sm:$0xff]
    %v1338 = vld [vmem:[%s6 + $0x18] sm:$0xff]
    %v1339 = vld [vmem:[%s6 + $0x20] sm:$0xff]
    %v1340 = vld [vmem:[%s6 + $0x28] sm:$0xff]
    %v1341 = vld [vmem:[%s6 + $0x30] sm:$0xff]
    %v1342 = vld [vmem:[%s6 + $0x38] sm:$0xff]
    %v1343 = vld [vmem:[%s6 + $0x40] sm:$0xff]
    %v1344 = vld [vmem:[%s6 + $0x48] sm:$0xff]
    %v1345 = vld [vmem:[%s6 + $0x50] sm:$0xff]
    %v1346 = vld [vmem:[%s6 + $0x58] sm:$0xff]
    %v1347 = vld [vmem:[%s6 + $0x60] sm:$0xff]
    %v1348 = vld [vmem:[%s6 + $0x68] sm:$0xff]
    %v1349 = vld [vmem:[%s6 + $0x70] sm:$0xff]
    %v1350 = vld [vmem:[%s6 + $0x78] sm:$0xff]
    %v1351 = vld [vmem:[%s6 + $0x80] sm:$0xff]
    %v1352 = vld [vmem:[%s6 + $0x88] sm:$0xff]
    %v1353 = vld [vmem:[%s6 + $0x90] sm:$0xff]
    %v1354 = vld [vmem:[%s6 + $0x98] sm:$0xff]
    %v1355 = vld [vmem:[%s6 + $0xa0] sm:$0xff]
    %v1356 = vld [vmem:[%s6 + $0xa8] sm:$0xff]
    %v1357 = vld [vmem:[%s6 + $0xb0] sm:$0xff]
    %v1358 = vld [vmem:[%s6 + $0xb8] sm:$0xff]
    %v1359 = vld [vmem:[%s6 + $0xc0] sm:$0xff]
    %v1360 = vld [vmem:[%s6 + $0xc8] sm:$0xff]
    %v1361 = vld [vmem:[%s6 + $0xd0] sm:$0xff]
    %v1362 = vld [vmem:[%s6 + $0xd8] sm:$0xff]
    %v1363 = vld [vmem:[%s6 + $0xe0] sm:$0xff]
    %v1364 = vld [vmem:[%s6 + $0xe8] sm:$0xff]
    %v1365 = vld [vmem:[%s6 + $0xf0] sm:$0xff]
    %v1366 = vld [vmem:[%s6 + $0xf8] sm:$0xff]
    %v1367 = vld [vmem:[%s6 + $0x100] sm:$0xff]
    %v1368 = vld [vmem:[%s6 + $0x108] sm:$0xff]
    %v1369 = vld [vmem:[%s6 + $0x110] sm:$0xff]
    %v1370 = vld [vmem:[%s6 + $0x118] sm:$0xff]
    %v1371 = vld [vmem:[%s6 + $0x120] sm:$0xff]
    %v1372 = vld [vmem:[%s6 + $0x128] sm:$0xff]
    %v1373 = vld [vmem:[%s6 + $0x130] sm:$0xff]
    %v1374 = vld [vmem:[%s6 + $0x138] sm:$0xff]
    %v1375 = vld [vmem:[%s6 + $0x140] sm:$0xff]
    %v1376 = vld [vmem:[%s6 + $0x148] sm:$0xff]
    %v1377 = vld [vmem:[%s6 + $0x150] sm:$0xff]
    %v1378 = vld [vmem:[%s6 + $0x158] sm:$0xff]
    %v1379 = vld [vmem:[%s6 + $0x160] sm:$0xff]
    %v1380 = vld [vmem:[%s6 + $0x168] sm:$0xff]
    %v1381 = vld [vmem:[%s6 + $0x170] sm:$0xff]
    %v1382 = vld [vmem:[%s6 + $0x178] sm:$0xff]
    %v1383 = vld [vmem:[%s6 + $0x180] sm:$0xff]
    %v1384 = vld [vmem:[%s6 + $0x188] sm:$0xff]
    %v1385 = vld [vmem:[%s6 + $0x190] sm:$0xff]
    %v1386 = vld [vmem:[%s6 + $0x198] sm:$0xff]
    %v1387 = vld [vmem:[%s6 + $0x1a0] sm:$0xff]
    %v1388 = vld [vmem:[%s6 + $0x1a8] sm:$0xff]
    %v1389 = vld [vmem:[%s6 + $0x1b0] sm:$0xff]
    %v1390 = vld [vmem:[%s6 + $0x1b8] sm:$0xff]
    %v1391 = vld [vmem:[%s6 + $0x1c0] sm:$0xff]
    %v1392 = vld [vmem:[%s6 + $0x1c8] sm:$0xff]
    %v1393 = vld [vmem:[%s6 + $0x1d0] sm:$0xff]
    %v1394 = vld [vmem:[%s6 + $0x1d8] sm:$0xff]
    %v1395 = vld [vmem:[%s6 + $0x1e0] sm:$0xff]
    %v1396 = vld [vmem:[%s6 + $0x1e8] sm:$0xff]
    %v1397 = vld [vmem:[%s6 + $0x1f0] sm:$0xff]
    %v1398 = vld [vmem:[%s6 + $0x1f8] sm:$0xff]
    %v1400 = vsel %vm121, %v1327, 0
    %1402 = vmatpush.msra.mxu0 0.0
    %1403 = vmatpush.msra.mxu0 0.0
    %1404 = vmatpush.msra.mxu0 0.0
    %1405 = vmatpush.msra.mxu0 0.0
    %1406 = vmatpush.msra.mxu0 0.0
    %1407 = vmatpush.msra.mxu0 0.0
    %1408 = vmatpush.msra.mxu0 0.0
    %1409 = vmatpush.msra.mxu0 0.0
    %1410 = vmatpush.msra.mxu0 %v1342
    %1411 = vmatpush.msra.mxu0 %v1341
    %1412 = vmatpush.msra.mxu0 %v1340
    %1413 = vmatpush.msra.mxu0 %v1339
    %1414 = vmatpush.msra.mxu0 %v1338
    %1415 = vmatpush.msra.mxu0 %v1337
    %1416 = vmatpush.msra.mxu0 %v1336
    %1417 = vmatpush.msra.mxu0 %v1335
    %1418 = vmatmul.f32.gmra.mxu0 %v1400
    %v1419 = vpop.f32.mrf.mxu0
    %v1420 = vadd.f32 0.0, %v1419
    %1421 = vdwg.mxu0
    %v1423 = vsel %vm121, %v1328, 0
    %1425 = vmatpush.msra.mxu0 0.0
    %1426 = vmatpush.msra.mxu0 0.0
    %1427 = vmatpush.msra.mxu0 0.0
    %1428 = vmatpush.msra.mxu0 0.0
    %1429 = vmatpush.msra.mxu0 0.0
    %1430 = vmatpush.msra.mxu0 0.0
    %1431 = vmatpush.msra.mxu0 0.0
    %1432 = vmatpush.msra.mxu0 0.0
    %1433 = vmatpush.msra.mxu0 %v1350
    %1434 = vmatpush.msra.mxu0 %v1349
    %1435 = vmatpush.msra.mxu0 %v1348
    %1436 = vmatpush.msra.mxu0 %v1347
    %1437 = vmatpush.msra.mxu0 %v1346
    %1438 = vmatpush.msra.mxu0 %v1345
    %1439 = vmatpush.msra.mxu0 %v1344
    %1440 = vmatpush.msra.mxu0 %v1343
    %1441 = vmatmul.f32.gmra.mxu0 %v1423
    %v1442 = vpop.f32.mrf.mxu0
    %v1443 = vadd.f32 0.0, %v1442
    %1444 = vdwg.mxu0
    %v1446 = vsel %vm121, %v1329, 0
    %1448 = vmatpush.msra.mxu0 0.0
    %1449 = vmatpush.msra.mxu0 0.0
    %1450 = vmatpush.msra.mxu0 0.0
    %1451 = vmatpush.msra.mxu0 0.0
    %1452 = vmatpush.msra.mxu0 0.0
    %1453 = vmatpush.msra.mxu0 0.0
    %1454 = vmatpush.msra.mxu0 0.0
    %1455 = vmatpush.msra.mxu0 0.0
    %1456 = vmatpush.msra.mxu0 %v1358
    %1457 = vmatpush.msra.mxu0 %v1357
    %1458 = vmatpush.msra.mxu0 %v1356
    %1459 = vmatpush.msra.mxu0 %v1355
    %1460 = vmatpush.msra.mxu0 %v1354
    %1461 = vmatpush.msra.mxu0 %v1353
    %1462 = vmatpush.msra.mxu0 %v1352
    %1463 = vmatpush.msra.mxu0 %v1351
    %1464 = vmatmul.f32.gmra.mxu0 %v1446
    %v1465 = vpop.f32.mrf.mxu0
    %v1466 = vadd.f32 0.0, %v1465
    %1467 = vdwg.mxu0
    %v1469 = vsel %vm121, %v1330, 0
    %1471 = vmatpush.msra.mxu0 0.0
    %1472 = vmatpush.msra.mxu0 0.0
    %1473 = vmatpush.msra.mxu0 0.0
    %1474 = vmatpush.msra.mxu0 0.0
    %1475 = vmatpush.msra.mxu0 0.0
    %1476 = vmatpush.msra.mxu0 0.0
    %1477 = vmatpush.msra.mxu0 0.0
    %1478 = vmatpush.msra.mxu0 0.0
    %1479 = vmatpush.msra.mxu0 %v1366
    %1480 = vmatpush.msra.mxu0 %v1365
    %1481 = vmatpush.msra.mxu0 %v1364
    %1482 = vmatpush.msra.mxu0 %v1363
    %1483 = vmatpush.msra.mxu0 %v1362
    %1484 = vmatpush.msra.mxu0 %v1361
    %1485 = vmatpush.msra.mxu0 %v1360
    %1486 = vmatpush.msra.mxu0 %v1359
    %1487 = vmatmul.f32.gmra.mxu0 %v1469
    %v1488 = vpop.f32.mrf.mxu0
    %v1489 = vadd.f32 0.0, %v1488
    %1490 = vdwg.mxu0
    %v1492 = vsel %vm121, %v1331, 0
    %1494 = vmatpush.msra.mxu0 0.0
    %1495 = vmatpush.msra.mxu0 0.0
    %1496 = vmatpush.msra.mxu0 0.0
    %1497 = vmatpush.msra.mxu0 0.0
    %1498 = vmatpush.msra.mxu0 0.0
    %1499 = vmatpush.msra.mxu0 0.0
    %1500 = vmatpush.msra.mxu0 0.0
    %1501 = vmatpush.msra.mxu0 0.0
    %1502 = vmatpush.msra.mxu0 %v1374
    %1503 = vmatpush.msra.mxu0 %v1373
    %1504 = vmatpush.msra.mxu0 %v1372
    %1505 = vmatpush.msra.mxu0 %v1371
    %1506 = vmatpush.msra.mxu0 %v1370
    %1507 = vmatpush.msra.mxu0 %v1369
    %1508 = vmatpush.msra.mxu0 %v1368
    %1509 = vmatpush.msra.mxu0 %v1367
    %1510 = vmatmul.f32.gmra.mxu0 %v1492
    %v1511 = vpop.f32.mrf.mxu0
    %v1512 = vadd.f32 0.0, %v1511
    %1513 = vdwg.mxu0
    %v1515 = vsel %vm121, %v1332, 0
    %1517 = vmatpush.msra.mxu0 0.0
    %1518 = vmatpush.msra.mxu0 0.0
    %1519 = vmatpush.msra.mxu0 0.0
    %1520 = vmatpush.msra.mxu0 0.0
    %1521 = vmatpush.msra.mxu0 0.0
    %1522 = vmatpush.msra.mxu0 0.0
    %1523 = vmatpush.msra.mxu0 0.0
    %1524 = vmatpush.msra.mxu0 0.0
    %1525 = vmatpush.msra.mxu0 %v1382
    %1526 = vmatpush.msra.mxu0 %v1381
    %1527 = vmatpush.msra.mxu0 %v1380
    %1528 = vmatpush.msra.mxu0 %v1379
    %1529 = vmatpush.msra.mxu0 %v1378
    %1530 = vmatpush.msra.mxu0 %v1377
    %1531 = vmatpush.msra.mxu0 %v1376
    %1532 = vmatpush.msra.mxu0 %v1375
    %1533 = vmatmul.f32.gmra.mxu0 %v1515
    %v1534 = vpop.f32.mrf.mxu0
    %v1535 = vadd.f32 0.0, %v1534
    %1536 = vdwg.mxu0
    %v1538 = vsel %vm121, %v1333, 0
    %1540 = vmatpush.msra.mxu0 0.0
    %1541 = vmatpush.msra.mxu0 0.0
    %1542 = vmatpush.msra.mxu0 0.0
    %1543 = vmatpush.msra.mxu0 0.0
    %1544 = vmatpush.msra.mxu0 0.0
    %1545 = vmatpush.msra.mxu0 0.0
    %1546 = vmatpush.msra.mxu0 0.0
    %1547 = vmatpush.msra.mxu0 0.0
    %1548 = vmatpush.msra.mxu0 %v1390
    %1549 = vmatpush.msra.mxu0 %v1389
    %1550 = vmatpush.msra.mxu0 %v1388
    %1551 = vmatpush.msra.mxu0 %v1387
    %1552 = vmatpush.msra.mxu0 %v1386
    %1553 = vmatpush.msra.mxu0 %v1385
    %1554 = vmatpush.msra.mxu0 %v1384
    %1555 = vmatpush.msra.mxu0 %v1383
    %1556 = vmatmul.f32.gmra.mxu0 %v1538
    %v1557 = vpop.f32.mrf.mxu0
    %v1558 = vadd.f32 0.0, %v1557
    %1559 = vdwg.mxu0
    %v1561 = vsel %vm121, %v1334, 0
    %1563 = vmatpush.msra.mxu0 0.0
    %1564 = vmatpush.msra.mxu0 0.0
    %1565 = vmatpush.msra.mxu0 0.0
    %1566 = vmatpush.msra.mxu0 0.0
    %1567 = vmatpush.msra.mxu0 0.0
    %1568 = vmatpush.msra.mxu0 0.0
    %1569 = vmatpush.msra.mxu0 0.0
    %1570 = vmatpush.msra.mxu0 0.0
    %1571 = vmatpush.msra.mxu0 %v1398
    %1572 = vmatpush.msra.mxu0 %v1397
    %1573 = vmatpush.msra.mxu0 %v1396
    %1574 = vmatpush.msra.mxu0 %v1395
    %1575 = vmatpush.msra.mxu0 %v1394
    %1576 = vmatpush.msra.mxu0 %v1393
    %1577 = vmatpush.msra.mxu0 %v1392
    %1578 = vmatpush.msra.mxu0 %v1391
    %1579 = vmatmul.f32.gmra.mxu0 %v1561
    %v1580 = vpop.f32.mrf.mxu0
    %v1581 = vadd.f32 0.0, %v1580
    %1582 = vdwg.mxu0
    %vm1583 = vcmask 25600
    %v1584 = vsel %vm1583, %v1420, 0.0
    %v1585 = vsel %vm1583, %v1443, 0.0
    %v1586 = vadd.f32 %v1584, %v1585
    %v1587 = vsel %vm1583, %v1466, 0.0
    %v1588 = vadd.f32 %v1586, %v1587
    %v1589 = vsel %vm1583, %v1489, 0.0
    %v1590 = vadd.f32 %v1588, %v1589
    %v1591 = vsel %vm1583, %v1512, 0.0
    %v1592 = vadd.f32 %v1590, %v1591
    %v1593 = vsel %vm1583, %v1535, 0.0
    %v1594 = vadd.f32 %v1592, %v1593
    %v1595 = vsel %vm1583, %v1558, 0.0
    %v1596 = vadd.f32 %v1594, %v1595
    %v1597 = vsel %vm1583, %v1581, 0.0
    %v1598 = vadd.f32 %v1596, %v1597
    %v1599 = vld [vmem:[%s7] sm:$0x1]
    %v1601 = vperm.slane %v1599, 0
    %v1603 = vadd.f32 %v1598, %v1601
    %v1604 = vxor.u32 %v1603, 2147483648
    %v1605 = vmul.f32 %v1604, 1.442695
    %v1606 = vpow.pop %v1605
    %v1607 = vadd.f32 %v1606, 1.0
    %v1608 = vrcp.pop %v1607
    %v1609 = vmul.f32 %v1607, %v1608
    %v1610 = vsub.f32 1.0, %v1609
    %v1611 = vmul.f32 %v1608, %v1610
    %v1612 = vadd.f32 %v1608, %v1611
    %vm1613 = vweird.f32 %v1607
    %vm1614 = vweird.f32 %v1608
    %vm1615 = vmor %vm1613, %vm1614
    %v1616 = vsel %vm1615, %v1608, %v1612
    %v1617 = vand.u32 2147483647, %v1607
    %vm1618 = vcmp.eq.f32.partialorder %v1617, 8.507059e+37
    %v1619 = vand.u32 %v1607, 2147483648
    %v1620 = vor.u32 1.1754944e-38, %v1619
    %v1621 = vsel %vm1618, %v1620, %v1616
    %v1622 = vmul.f32 1.0, %v1621
    %1623 = vst.msk [vmem:[#allocation6] sm:$0x3] %vm1583, %v1622
    // Predicated region
    $region34: #{bilstm_model_forward.1} parent=1 // pred_check
      _
    $region35: #{bilstm_model_forward.1} parent=1 // pred_check_branch
      %1625 = sbr.rel (0) target = $region37
    $region36: #{bilstm_model_forward.1} parent=1 // pred_region
      %1627 = vsyncadd [#allocation7], 0
      %s1629 = sshll.u32 [#allocation6], 4
      %s1630 = int_to_ptr.vmem [resolvable:$true] %s1629
      %s1631 = sshll.u32 %s8, 4
      %s1632 = int_to_ptr.hbm [resolvable:$true] %s1631
      %1634 = dma.vmem_to_hbm [thread:$0]  %s1630, 32, %s1632, [#allocation7]
    $region37: #{bilstm_model_forward.1} parent=1 // pred_fallthru
      _
    // Predicated region
    $region38: #{bilstm_model_forward.1} parent=1 // pred_check
      _
    $region39: #{bilstm_model_forward.1} parent=1 // pred_check_branch
      %1636 = sbr.rel (0) target = $region41
    $region40: #{bilstm_model_forward.1} parent=1 // pred_region
      %1638 = dma.done [#allocation7], 32
    $region41: #{bilstm_model_forward.1} parent=1 // pred_fallthru
      _
    %1639 = vsyncpa [#allocation7], 1

</llo_original>
